<compile_context>
chip_gen: v5e
topology: v5e:2x2
jax: 0.10.0
libtpu: 0.0.40
codegen_flags: <defaults>
</compile_context>

<pallas_src>
import jax
import jax.numpy as jnp
from jax.experimental import pallas as pl
from jax.experimental.pallas import tpu as pltpu


def _make_fused_lstm_kernel(num_layers: int, seq_len: int, batch: int,
                            input_size: int, hidden: int):
    """Builds the fused (multi-layer LSTM + FC) kernel body.

    Ref order:
      inputs : x2d   (B*T, I)    batch-first rows (row = b*T + t)
               w_ih  (L, K, 4H)  K = max(I, H); layer 0 valid in first I rows (rest zero)
               w_hh  (L, H, 4H)
               b     (L, 1, 4H)  pre-summed b_ih + b_hh
               w_fc  (H, O), b_fc (1, O)
      outputs: out (B, O)
      scratch: seq (T*B, H)   time-major inter-layer sequence (input to layer l+1)
               xg  (T*B, 4H)  precomputed input-side gate pre-activations
    """
    T, B, I, H = seq_len, batch, input_size, hidden

    def kernel(x_ref, w_ih_ref, w_hh_ref, b_ref, w_fc_ref, b_fc_ref,
               out_ref, seq_ref, xg_ref):
        h = None
        for layer in range(num_layers):
            last_layer = layer == num_layers - 1
            in_sz = I if layer == 0 else H

            w_ih = w_ih_ref[layer]                      # (K, 4H)
            if w_ih.shape[0] != in_sz:
                w_ih = w_ih[:in_sz, :]                  # drop zero padding rows
            b_l = b_ref[layer]                          # (1, 4H)

            # ---- Off the recurrent chain: ONE batched matmul for all timesteps ----
            x2d = x_ref[...] if layer == 0 else seq_ref[...]
            xg_ref[...] = (
                jnp.dot(x2d, w_ih, preferred_element_type=jnp.float32) + b_l
            )

            # ---- Serial recurrent chain: only h @ W_hh + fused elementwise ----
            w_hh = w_hh_ref[layer]                      # (H, 4H)
            c = None
            for t in range(T):
                if layer == 0:
                    # layer-0 xg rows are batch-first: rows {b*T + t}
                    xg_t = xg_ref[pl.ds(t, B, stride=T), :]
                else:
                    # layers > 0 are time-major: contiguous block of B rows
                    xg_t = xg_ref[pl.ds(t * B, B), :]

                if t == 0:
                    gates = xg_t                        # h == 0: skip the matmul
                else:
                    gates = xg_t + jnp.dot(
                        h, w_hh, preferred_element_type=jnp.float32)

                # Two full-width EUP passes over the lane-dense (B, 4H) tile.
                sig_all = jax.nn.sigmoid(gates)
                tanh_all = jnp.tanh(gates)
                i_g = sig_all[:, 0 * H:1 * H]
                f_g = sig_all[:, 1 * H:2 * H]
                g_g = tanh_all[:, 2 * H:3 * H]
                o_g = sig_all[:, 3 * H:4 * H]

                c = i_g * g_g if t == 0 else f_g * c + i_g * g_g
                h = o_g * jnp.tanh(c)
                if not last_layer:
                    seq_ref[pl.ds(t * B, B), :] = h

        # Final linear layer on the last timestep of the last layer.
        out_ref[...] = (
            jnp.dot(h, w_fc_ref[...], preferred_element_type=jnp.float32)
            + b_fc_ref[...]
        ).astype(out_ref.dtype)

    return kernel


@jax.jit
def simple_lstm_forward(x, packed):
    """x: (B, T, input_size) batch-first, as in the PyTorch module."""
    w_ih_all = packed["w_ih"]   # (L, K, 4H)
    w_hh_all = packed["w_hh"]   # (L, H, 4H)
    b_all = packed["b"]         # (L, 1, 4H)
    w_fc_t = packed["w_fc"]     # (H, O)
    b_fc = packed["b_fc"]       # (1, O)

    B, T, I = x.shape
    L, H, _ = w_hh_all.shape
    O = w_fc_t.shape[1]

    # Free reshape of the batch-first layout (NO transpose op, no HBM round trip).
    x2d = x.reshape(B * T, I).astype(jnp.float32)

    vmem = pl.BlockSpec(memory_space=pltpu.MemorySpace.VMEM)
    return pl.pallas_call(
        _make_fused_lstm_kernel(L, T, B, I, H),
        out_shape=jax.ShapeDtypeStruct((B, O), jnp.float32),
        in_specs=[vmem] * 6,
        out_specs=vmem,
        scratch_shapes=[
            pltpu.VMEM((T * B, H), jnp.float32),       # inter-layer sequence (time-major)
            pltpu.VMEM((T * B, 4 * H), jnp.float32),   # precomputed input-side gates
        ],
    )(x2d, w_ih_all, w_hh_all, b_all, w_fc_t, b_fc)


def init_params(key, input_size, hidden_size, num_layers, output_size):
    """PyTorch-layout parameters (matches torch.nn.LSTM / nn.Linear default init ranges)."""
    params = {"lstm": [], "fc": None}
    k = 1.0 / jnp.sqrt(hidden_size)
    for layer in range(num_layers):
        in_sz = input_size if layer == 0 else hidden_size
        key, k1, k2, k3, k4 = jax.random.split(key, 5)
        w_ih = jax.random.uniform(k1, (4 * hidden_size, in_sz), jnp.float32, -k, k)
        w_hh = jax.random.uniform(k2, (4 * hidden_size, hidden_size), jnp.float32, -k, k)
        b_ih = jax.random.uniform(k3, (4 * hidden_size,), jnp.float32, -k, k)
        b_hh = jax.random.uniform(k4, (4 * hidden_size,), jnp.float32, -k, k)
        params["lstm"].append((w_ih, w_hh, b_ih, b_hh))
    key, k5, k6 = jax.random.split(key, 3)
    kf = 1.0 / jnp.sqrt(hidden_size)
    w_fc = jax.random.uniform(k5, (output_size, hidden_size), jnp.float32, -kf, kf)
    b_fc = jax.random.uniform(k6, (output_size,), jnp.float32, -kf, kf)
    params["fc"] = (w_fc, b_fc)
    return params


def pack_params(params, input_size, hidden_size):
    """One-time conversion to kernel layout: pre-transpose, pre-sum biases, stack layers."""
    lstm = params["lstm"]
    L, H = len(lstm), hidden_size
    K = max(input_size, H)
    w_ih_all = jnp.zeros((L, K, 4 * H), jnp.float32)
    w_hh_all = jnp.zeros((L, H, 4 * H), jnp.float32)
    b_all = jnp.zeros((L, 1, 4 * H), jnp.float32)
    for l, (w_ih, w_hh, b_ih, b_hh) in enumerate(lstm):
        in_sz = w_ih.shape[1]
        w_ih_all = w_ih_all.at[l, :in_sz, :].set(w_ih.T)
        w_hh_all = w_hh_all.at[l].set(w_hh.T)
        b_all = b_all.at[l, 0].set(b_ih + b_hh)
    w_fc, b_fc = params["fc"]
    return {
        "w_ih": w_ih_all,
        "w_hh": w_hh_all,
        "b": b_all,
        "w_fc": jnp.asarray(w_fc.T),
        "b_fc": b_fc[None, :],
    }


def reference_forward(x, params):
    """Pure-JAX reference matching torch.nn.LSTM semantics (gate order i, f, g, o)."""
    h_seq = jnp.transpose(x, (1, 0, 2)).astype(jnp.float32)
    B = x.shape[0]
    for (w_ih, w_hh, b_ih, b_hh) in params["lstm"]:
        H = w_hh.shape[1]
        h = jnp.zeros((B, H), jnp.float32)
        c = jnp.zeros((B, H), jnp.float32)
        outs = []
        for t in range(h_seq.shape[0]):
            gates = h_seq[t] @ w_ih.T + h @ w_hh.T + b_ih + b_hh
            i_g = jax.nn.sigmoid(gates[:, 0 * H:1 * H])
            f_g = jax.nn.sigmoid(gates[:, 1 * H:2 * H])
            g_g = jnp.tanh(gates[:, 2 * H:3 * H])
            o_g = jax.nn.sigmoid(gates[:, 3 * H:4 * H])
            c = f_g * c + i_g * g_g
            h = o_g * jnp.tanh(c)
            outs.append(h)
        h_seq = jnp.stack(outs, axis=0)
    w_fc, b_fc = params["fc"]
    return h_seq[-1] @ w_fc.T + b_fc


if __name__ == "__main__":
    input_size, hidden_size, num_layers, output_size = 16, 32, 2, 8
    batch, seq = 2, 8

    key = jax.random.PRNGKey(0)
    key, kx, kp = jax.random.split(key, 3)
    x = jax.random.normal(kx, (batch, seq, input_size), jnp.float32)
    params = init_params(kp, input_size, hidden_size, num_layers, output_size)
    packed = pack_params(params, input_size, hidden_size)

    out = simple_lstm_forward(x, packed)
    jax.block_until_ready(out)
    assert out.shape == (batch, output_size)

    ref = reference_forward(x, params)
    assert jnp.allclose(out, ref, atol=1e-4, rtol=1e-4), "Pallas output mismatch vs reference"

    print("KERNEL_OK")
</pallas_src>

<mosaic_0001>
module attributes {stable_mosaic.version = 11 : i64} {
  func.func @kernel(%arg0: memref<16x16xf32, #tpu.memory_space<vmem>>, %arg1: memref<2x32x128xf32, #tpu.memory_space<vmem>>, %arg2: memref<2x32x128xf32, #tpu.memory_space<vmem>>, %arg3: memref<2x1x128xf32, #tpu.memory_space<vmem>>, %arg4: memref<32x8xf32, #tpu.memory_space<vmem>>, %arg5: memref<1x8xf32, #tpu.memory_space<vmem>>, %arg6: memref<2x8xf32, #tpu.memory_space<vmem>>, %arg7: memref<16x32xf32, #tpu.memory_space<vmem>>, %arg8: memref<16x128xf32, #tpu.memory_space<vmem>>) attributes {dimension_semantics = [], scalar_prefetch = 0 : i64, scratch_operands = 2 : i64, tpu.core_type = #tpu.core_type<tc>} {
    %c0 = arith.constant 0 : index
    %c0_0 = arith.constant 0 : index
    %c0_1 = arith.constant 0 : index
    %0 = vector.load %arg1[%c0, %c0_0, %c0_1] : memref<2x32x128xf32, #tpu.memory_space<vmem>>, vector<1x32x128xf32>
    %1 = vector.shape_cast %0 : vector<1x32x128xf32> to vector<32x128xf32>
    %2 = vector.extract_strided_slice %1 {offsets = [0, 0], sizes = [16, 128], strides = [1, 1]} : vector<32x128xf32> to vector<16x128xf32>
    %c0_2 = arith.constant 0 : index
    %c0_3 = arith.constant 0 : index
    %c0_4 = arith.constant 0 : index
    %3 = vector.load %arg3[%c0_2, %c0_3, %c0_4] : memref<2x1x128xf32, #tpu.memory_space<vmem>>, vector<1x1x128xf32>
    %4 = vector.shape_cast %3 : vector<1x1x128xf32> to vector<1x128xf32>
    %c0_5 = arith.constant 0 : index
    %c0_6 = arith.constant 0 : index
    %5 = vector.load %arg0[%c0_5, %c0_6] : memref<16x16xf32, #tpu.memory_space<vmem>>, vector<16x16xf32>
    %cst = arith.constant dense<0.000000e+00> : vector<16x128xf32>
    %6 = tpu.matmul %5, %2, %cst {dimension_numbers = #tpu.dot_dimension_numbers<[1], [0], [0], [1], [0, 0, 1, 1], [], []>} : vector<16x16xf32>, vector<16x128xf32>, vector<16x128xf32> -> vector<16x128xf32>
    %7 = vector.broadcast %4 : vector<1x128xf32> to vector<16x128xf32>
    %8 = arith.addf %6, %7 : vector<16x128xf32>
    %c0_7 = arith.constant 0 : index
    %c0_8 = arith.constant 0 : index
    %9 = vector.load %arg8[%c0_7, %c0_8] : memref<16x128xf32, #tpu.memory_space<vmem>>, vector<16x128xf32>
    tpu.vector_store %arg8[%c0_7, %c0_8], %8 {strides = array<i32>} : memref<16x128xf32, #tpu.memory_space<vmem>>, vector<16x128xf32>,
    %c0_9 = arith.constant 0 : index
    %c0_10 = arith.constant 0 : index
    %c0_11 = arith.constant 0 : index
    %10 = vector.load %arg2[%c0_9, %c0_10, %c0_11] : memref<2x32x128xf32, #tpu.memory_space<vmem>>, vector<1x32x128xf32>
    %11 = vector.shape_cast %10 : vector<1x32x128xf32> to vector<32x128xf32>
    %c0_12 = arith.constant 0 : index
    %c0_13 = arith.constant 0 : index
    %12 = tpu.strided_load %arg8[%c0_12, %c0_13] {strides = array<i32: 8, 1>} : memref<16x128xf32, #tpu.memory_space<vmem>>, vector<2x128xf32>
    %13 = arith.negf %12 : vector<2x128xf32>
    %14 = math.exp %13 : vector<2x128xf32>
    %cst_14 = arith.constant 1.000000e+00 : f32
    %15 = vector.broadcast %cst_14 : f32 to vector<2x128xf32>
    %16 = arith.addf %15, %14 : vector<2x128xf32>
    %17 = arith.divf %15, %16 : vector<2x128xf32>
    %18 = math.tanh %12 : vector<2x128xf32>
    %19 = vector.extract_strided_slice %17 {offsets = [0, 0], sizes = [2, 32], strides = [1, 1]} : vector<2x128xf32> to vector<2x32xf32>
    %20 = vector.extract_strided_slice %18 {offsets = [0, 64], sizes = [2, 32], strides = [1, 1]} : vector<2x128xf32> to vector<2x32xf32>
    %21 = vector.extract_strided_slice %17 {offsets = [0, 96], sizes = [2, 32], strides = [1, 1]} : vector<2x128xf32> to vector<2x32xf32>
    %22 = arith.mulf %19, %20 : vector<2x32xf32>
    %23 = math.tanh %22 : vector<2x32xf32>
    %24 = arith.mulf %21, %23 : vector<2x32xf32>
    %c0_15 = arith.constant 0 : index
    %c0_16 = arith.constant 0 : index
    %25 = vector.load %arg7[%c0_15, %c0_16] : memref<16x32xf32, #tpu.memory_space<vmem>>, vector<2x32xf32>
    tpu.vector_store %arg7[%c0_15, %c0_16], %24 {strides = array<i32>} : memref<16x32xf32, #tpu.memory_space<vmem>>, vector<2x32xf32>,
    %c1 = arith.constant 1 : index
    %c0_17 = arith.constant 0 : index
    %26 = tpu.strided_load %arg8[%c1, %c0_17] {strides = array<i32: 8, 1>} : memref<16x128xf32, #tpu.memory_space<vmem>>, vector<2x128xf32>
    %cst_18 = arith.constant dense<0.000000e+00> : vector<2x128xf32>
    %27 = tpu.matmul %24, %11, %cst_18 {dimension_numbers = #tpu.dot_dimension_numbers<[1], [0], [0], [1], [0, 0, 1, 1], [], []>} : vector<2x32xf32>, vector<32x128xf32>, vector<2x128xf32> -> vector<2x128xf32>
    %28 = arith.addf %26, %27 : vector<2x128xf32>
    %29 = arith.negf %28 : vector<2x128xf32>
    %30 = math.exp %29 : vector<2x128xf32>
    %cst_19 = arith.constant 1.000000e+00 : f32
    %31 = vector.broadcast %cst_19 : f32 to vector<2x128xf32>
    %32 = arith.addf %31, %30 : vector<2x128xf32>
    %33 = arith.divf %31, %32 : vector<2x128xf32>
    %34 = math.tanh %28 : vector<2x128xf32>
    %35 = vector.extract_strided_slice %33 {offsets = [0, 0], sizes = [2, 32], strides = [1, 1]} : vector<2x128xf32> to vector<2x32xf32>
    %36 = vector.extract_strided_slice %33 {offsets = [0, 32], sizes = [2, 32], strides = [1, 1]} : vector<2x128xf32> to vector<2x32xf32>
    %37 = vector.extract_strided_slice %34 {offsets = [0, 64], sizes = [2, 32], strides = [1, 1]} : vector<2x128xf32> to vector<2x32xf32>
    %38 = vector.extract_strided_slice %33 {offsets = [0, 96], sizes = [2, 32], strides = [1, 1]} : vector<2x128xf32> to vector<2x32xf32>
    %39 = arith.mulf %36, %22 : vector<2x32xf32>
    %40 = arith.mulf %35, %37 : vector<2x32xf32>
    %41 = arith.addf %39, %40 : vector<2x32xf32>
    %42 = math.tanh %41 : vector<2x32xf32>
    %43 = arith.mulf %38, %42 : vector<2x32xf32>
    %c2 = arith.constant 2 : index
    %c0_20 = arith.constant 0 : index
    %44 = vector.load %arg7[%c2, %c0_20] : memref<16x32xf32, #tpu.memory_space<vmem>>, vector<2x32xf32>
    tpu.vector_store %arg7[%c2, %c0_20], %43 {strides = array<i32>} : memref<16x32xf32, #tpu.memory_space<vmem>>, vector<2x32xf32>,
    %c2_21 = arith.constant 2 : index
    %c0_22 = arith.constant 0 : index
    %45 = tpu.strided_load %arg8[%c2_21, %c0_22] {strides = array<i32: 8, 1>} : memref<16x128xf32, #tpu.memory_space<vmem>>, vector<2x128xf32>
    %cst_23 = arith.constant dense<0.000000e+00> : vector<2x128xf32>
    %46 = tpu.matmul %43, %11, %cst_23 {dimension_numbers = #tpu.dot_dimension_numbers<[1], [0], [0], [1], [0, 0, 1, 1], [], []>} : vector<2x32xf32>, vector<32x128xf32>, vector<2x128xf32> -> vector<2x128xf32>
    %47 = arith.addf %45, %46 : vector<2x128xf32>
    %48 = arith.negf %47 : vector<2x128xf32>
    %49 = math.exp %48 : vector<2x128xf32>
    %cst_24 = arith.constant 1.000000e+00 : f32
    %50 = vector.broadcast %cst_24 : f32 to vector<2x128xf32>
    %51 = arith.addf %50, %49 : vector<2x128xf32>
    %52 = arith.divf %50, %51 : vector<2x128xf32>
    %53 = math.tanh %47 : vector<2x128xf32>
    %54 = vector.extract_strided_slice %52 {offsets = [0, 0], sizes = [2, 32], strides = [1, 1]} : vector<2x128xf32> to vector<2x32xf32>
    %55 = vector.extract_strided_slice %52 {offsets = [0, 32], sizes = [2, 32], strides = [1, 1]} : vector<2x128xf32> to vector<2x32xf32>
    %56 = vector.extract_strided_slice %53 {offsets = [0, 64], sizes = [2, 32], strides = [1, 1]} : vector<2x128xf32> to vector<2x32xf32>
    %57 = vector.extract_strided_slice %52 {offsets = [0, 96], sizes = [2, 32], strides = [1, 1]} : vector<2x128xf32> to vector<2x32xf32>
    %58 = arith.mulf %55, %41 : vector<2x32xf32>
    %59 = arith.mulf %54, %56 : vector<2x32xf32>
    %60 = arith.addf %58, %59 : vector<2x32xf32>
    %61 = math.tanh %60 : vector<2x32xf32>
    %62 = arith.mulf %57, %61 : vector<2x32xf32>
    %c4 = arith.constant 4 : index
    %c0_25 = arith.constant 0 : index
    %63 = vector.load %arg7[%c4, %c0_25] : memref<16x32xf32, #tpu.memory_space<vmem>>, vector<2x32xf32>
    tpu.vector_store %arg7[%c4, %c0_25], %62 {strides = array<i32>} : memref<16x32xf32, #tpu.memory_space<vmem>>, vector<2x32xf32>,
    %c3 = arith.constant 3 : index
    %c0_26 = arith.constant 0 : index
    %64 = tpu.strided_load %arg8[%c3, %c0_26] {strides = array<i32: 8, 1>} : memref<16x128xf32, #tpu.memory_space<vmem>>, vector<2x128xf32>
    %cst_27 = arith.constant dense<0.000000e+00> : vector<2x128xf32>
    %65 = tpu.matmul %62, %11, %cst_27 {dimension_numbers = #tpu.dot_dimension_numbers<[1], [0], [0], [1], [0, 0, 1, 1], [], []>} : vector<2x32xf32>, vector<32x128xf32>, vector<2x128xf32> -> vector<2x128xf32>
    %66 = arith.addf %64, %65 : vector<2x128xf32>
    %67 = arith.negf %66 : vector<2x128xf32>
    %68 = math.exp %67 : vector<2x128xf32>
    %cst_28 = arith.constant 1.000000e+00 : f32
    %69 = vector.broadcast %cst_28 : f32 to vector<2x128xf32>
    %70 = arith.addf %69, %68 : vector<2x128xf32>
    %71 = arith.divf %69, %70 : vector<2x128xf32>
    %72 = math.tanh %66 : vector<2x128xf32>
    %73 = vector.extract_strided_slice %71 {offsets = [0, 0], sizes = [2, 32], strides = [1, 1]} : vector<2x128xf32> to vector<2x32xf32>
    %74 = vector.extract_strided_slice %71 {offsets = [0, 32], sizes = [2, 32], strides = [1, 1]} : vector<2x128xf32> to vector<2x32xf32>
    %75 = vector.extract_strided_slice %72 {offsets = [0, 64], sizes = [2, 32], strides = [1, 1]} : vector<2x128xf32> to vector<2x32xf32>
    %76 = vector.extract_strided_slice %71 {offsets = [0, 96], sizes = [2, 32], strides = [1, 1]} : vector<2x128xf32> to vector<2x32xf32>
    %77 = arith.mulf %74, %60 : vector<2x32xf32>
    %78 = arith.mulf %73, %75 : vector<2x32xf32>
    %79 = arith.addf %77, %78 : vector<2x32xf32>
    %80 = math.tanh %79 : vector<2x32xf32>
    %81 = arith.mulf %76, %80 : vector<2x32xf32>
    %c6 = arith.constant 6 : index
    %c0_29 = arith.constant 0 : index
    %82 = vector.load %arg7[%c6, %c0_29] : memref<16x32xf32, #tpu.memory_space<vmem>>, vector<2x32xf32>
    tpu.vector_store %arg7[%c6, %c0_29], %81 {strides = array<i32>} : memref<16x32xf32, #tpu.memory_space<vmem>>, vector<2x32xf32>,
    %c4_30 = arith.constant 4 : index
    %c0_31 = arith.constant 0 : index
    %83 = tpu.strided_load %arg8[%c4_30, %c0_31] {strides = array<i32: 8, 1>} : memref<16x128xf32, #tpu.memory_space<vmem>>, vector<2x128xf32>
    %cst_32 = arith.constant dense<0.000000e+00> : vector<2x128xf32>
    %84 = tpu.matmul %81, %11, %cst_32 {dimension_numbers = #tpu.dot_dimension_numbers<[1], [0], [0], [1], [0, 0, 1, 1], [], []>} : vector<2x32xf32>, vector<32x128xf32>, vector<2x128xf32> -> vector<2x128xf32>
    %85 = arith.addf %83, %84 : vector<2x128xf32>
    %86 = arith.negf %85 : vector<2x128xf32>
    %87 = math.exp %86 : vector<2x128xf32>
    %cst_33 = arith.constant 1.000000e+00 : f32
    %88 = vector.broadcast %cst_33 : f32 to vector<2x128xf32>
    %89 = arith.addf %88, %87 : vector<2x128xf32>
    %90 = arith.divf %88, %89 : vector<2x128xf32>
    %91 = math.tanh %85 : vector<2x128xf32>
    %92 = vector.extract_strided_slice %90 {offsets = [0, 0], sizes = [2, 32], strides = [1, 1]} : vector<2x128xf32> to vector<2x32xf32>
    %93 = vector.extract_strided_slice %90 {offsets = [0, 32], sizes = [2, 32], strides = [1, 1]} : vector<2x128xf32> to vector<2x32xf32>
    %94 = vector.extract_strided_slice %91 {offsets = [0, 64], sizes = [2, 32], strides = [1, 1]} : vector<2x128xf32> to vector<2x32xf32>
    %95 = vector.extract_strided_slice %90 {offsets = [0, 96], sizes = [2, 32], strides = [1, 1]} : vector<2x128xf32> to vector<2x32xf32>
    %96 = arith.mulf %93, %79 : vector<2x32xf32>
    %97 = arith.mulf %92, %94 : vector<2x32xf32>
    %98 = arith.addf %96, %97 : vector<2x32xf32>
    %99 = math.tanh %98 : vector<2x32xf32>
    %100 = arith.mulf %95, %99 : vector<2x32xf32>
    %c8 = arith.constant 8 : index
    %c0_34 = arith.constant 0 : index
    %101 = vector.load %arg7[%c8, %c0_34] : memref<16x32xf32, #tpu.memory_space<vmem>>, vector<2x32xf32>
    tpu.vector_store %arg7[%c8, %c0_34], %100 {strides = array<i32>} : memref<16x32xf32, #tpu.memory_space<vmem>>, vector<2x32xf32>,
    %c5 = arith.constant 5 : index
    %c0_35 = arith.constant 0 : index
    %102 = tpu.strided_load %arg8[%c5, %c0_35] {strides = array<i32: 8, 1>} : memref<16x128xf32, #tpu.memory_space<vmem>>, vector<2x128xf32>
    %cst_36 = arith.constant dense<0.000000e+00> : vector<2x128xf32>
    %103 = tpu.matmul %100, %11, %cst_36 {dimension_numbers = #tpu.dot_dimension_numbers<[1], [0], [0], [1], [0, 0, 1, 1], [], []>} : vector<2x32xf32>, vector<32x128xf32>, vector<2x128xf32> -> vector<2x128xf32>
    %104 = arith.addf %102, %103 : vector<2x128xf32>
    %105 = arith.negf %104 : vector<2x128xf32>
    %106 = math.exp %105 : vector<2x128xf32>
    %cst_37 = arith.constant 1.000000e+00 : f32
    %107 = vector.broadcast %cst_37 : f32 to vector<2x128xf32>
    %108 = arith.addf %107, %106 : vector<2x128xf32>
    %109 = arith.divf %107, %108 : vector<2x128xf32>
    %110 = math.tanh %104 : vector<2x128xf32>
    %111 = vector.extract_strided_slice %109 {offsets = [0, 0], sizes = [2, 32], strides = [1, 1]} : vector<2x128xf32> to vector<2x32xf32>
    %112 = vector.extract_strided_slice %109 {offsets = [0, 32], sizes = [2, 32], strides = [1, 1]} : vector<2x128xf32> to vector<2x32xf32>
    %113 = vector.extract_strided_slice %110 {offsets = [0, 64], sizes = [2, 32], strides = [1, 1]} : vector<2x128xf32> to vector<2x32xf32>
    %114 = vector.extract_strided_slice %109 {offsets = [0, 96], sizes = [2, 32], strides = [1, 1]} : vector<2x128xf32> to vector<2x32xf32>
    %115 = arith.mulf %112, %98 : vector<2x32xf32>
    %116 = arith.mulf %111, %113 : vector<2x32xf32>
    %117 = arith.addf %115, %116 : vector<2x32xf32>
    %118 = math.tanh %117 : vector<2x32xf32>
    %119 = arith.mulf %114, %118 : vector<2x32xf32>
    %c10 = arith.constant 10 : index
    %c0_38 = arith.constant 0 : index
    %120 = vector.load %arg7[%c10, %c0_38] : memref<16x32xf32, #tpu.memory_space<vmem>>, vector<2x32xf32>
    tpu.vector_store %arg7[%c10, %c0_38], %119 {strides = array<i32>} : memref<16x32xf32, #tpu.memory_space<vmem>>, vector<2x32xf32>,
    %c6_39 = arith.constant 6 : index
    %c0_40 = arith.constant 0 : index
    %121 = tpu.strided_load %arg8[%c6_39, %c0_40] {strides = array<i32: 8, 1>} : memref<16x128xf32, #tpu.memory_space<vmem>>, vector<2x128xf32>
    %cst_41 = arith.constant dense<0.000000e+00> : vector<2x128xf32>
    %122 = tpu.matmul %119, %11, %cst_41 {dimension_numbers = #tpu.dot_dimension_numbers<[1], [0], [0], [1], [0, 0, 1, 1], [], []>} : vector<2x32xf32>, vector<32x128xf32>, vector<2x128xf32> -> vector<2x128xf32>
    %123 = arith.addf %121, %122 : vector<2x128xf32>
    %124 = arith.negf %123 : vector<2x128xf32>
    %125 = math.exp %124 : vector<2x128xf32>
    %cst_42 = arith.constant 1.000000e+00 : f32
    %126 = vector.broadcast %cst_42 : f32 to vector<2x128xf32>
    %127 = arith.addf %126, %125 : vector<2x128xf32>
    %128 = arith.divf %126, %127 : vector<2x128xf32>
    %129 = math.tanh %123 : vector<2x128xf32>
    %130 = vector.extract_strided_slice %128 {offsets = [0, 0], sizes = [2, 32], strides = [1, 1]} : vector<2x128xf32> to vector<2x32xf32>
    %131 = vector.extract_strided_slice %128 {offsets = [0, 32], sizes = [2, 32], strides = [1, 1]} : vector<2x128xf32> to vector<2x32xf32>
    %132 = vector.extract_strided_slice %129 {offsets = [0, 64], sizes = [2, 32], strides = [1, 1]} : vector<2x128xf32> to vector<2x32xf32>
    %133 = vector.extract_strided_slice %128 {offsets = [0, 96], sizes = [2, 32], strides = [1, 1]} : vector<2x128xf32> to vector<2x32xf32>
    %134 = arith.mulf %131, %117 : vector<2x32xf32>
    %135 = arith.mulf %130, %132 : vector<2x32xf32>
    %136 = arith.addf %134, %135 : vector<2x32xf32>
    %137 = math.tanh %136 : vector<2x32xf32>
    %138 = arith.mulf %133, %137 : vector<2x32xf32>
    %c12 = arith.constant 12 : index
    %c0_43 = arith.constant 0 : index
    %139 = vector.load %arg7[%c12, %c0_43] : memref<16x32xf32, #tpu.memory_space<vmem>>, vector<2x32xf32>
    tpu.vector_store %arg7[%c12, %c0_43], %138 {strides = array<i32>} : memref<16x32xf32, #tpu.memory_space<vmem>>, vector<2x32xf32>,
    %c7 = arith.constant 7 : index
    %c0_44 = arith.constant 0 : index
    %140 = tpu.strided_load %arg8[%c7, %c0_44] {strides = array<i32: 8, 1>} : memref<16x128xf32, #tpu.memory_space<vmem>>, vector<2x128xf32>
    %cst_45 = arith.constant dense<0.000000e+00> : vector<2x128xf32>
    %141 = tpu.matmul %138, %11, %cst_45 {dimension_numbers = #tpu.dot_dimension_numbers<[1], [0], [0], [1], [0, 0, 1, 1], [], []>} : vector<2x32xf32>, vector<32x128xf32>, vector<2x128xf32> -> vector<2x128xf32>
    %142 = arith.addf %140, %141 : vector<2x128xf32>
    %143 = arith.negf %142 : vector<2x128xf32>
    %144 = math.exp %143 : vector<2x128xf32>
    %cst_46 = arith.constant 1.000000e+00 : f32
    %145 = vector.broadcast %cst_46 : f32 to vector<2x128xf32>
    %146 = arith.addf %145, %144 : vector<2x128xf32>
    %147 = arith.divf %145, %146 : vector<2x128xf32>
    %148 = math.tanh %142 : vector<2x128xf32>
    %149 = vector.extract_strided_slice %147 {offsets = [0, 0], sizes = [2, 32], strides = [1, 1]} : vector<2x128xf32> to vector<2x32xf32>
    %150 = vector.extract_strided_slice %147 {offsets = [0, 32], sizes = [2, 32], strides = [1, 1]} : vector<2x128xf32> to vector<2x32xf32>
    %151 = vector.extract_strided_slice %148 {offsets = [0, 64], sizes = [2, 32], strides = [1, 1]} : vector<2x128xf32> to vector<2x32xf32>
    %152 = vector.extract_strided_slice %147 {offsets = [0, 96], sizes = [2, 32], strides = [1, 1]} : vector<2x128xf32> to vector<2x32xf32>
    %153 = arith.mulf %150, %136 : vector<2x32xf32>
    %154 = arith.mulf %149, %151 : vector<2x32xf32>
    %155 = arith.addf %153, %154 : vector<2x32xf32>
    %156 = math.tanh %155 : vector<2x32xf32>
    %157 = arith.mulf %152, %156 : vector<2x32xf32>
    %c14 = arith.constant 14 : index
    %c0_47 = arith.constant 0 : index
    %158 = vector.load %arg7[%c14, %c0_47] : memref<16x32xf32, #tpu.memory_space<vmem>>, vector<2x32xf32>
    tpu.vector_store %arg7[%c14, %c0_47], %157 {strides = array<i32>} : memref<16x32xf32, #tpu.memory_space<vmem>>, vector<2x32xf32>,
    %c1_48 = arith.constant 1 : index
    %c0_49 = arith.constant 0 : index
    %c0_50 = arith.constant 0 : index
    %159 = vector.load %arg1[%c1_48, %c0_49, %c0_50] : memref<2x32x128xf32, #tpu.memory_space<vmem>>, vector<1x32x128xf32>
    %160 = vector.shape_cast %159 : vector<1x32x128xf32> to vector<32x128xf32>
    %c1_51 = arith.constant 1 : index
    %c0_52 = arith.constant 0 : index
    %c0_53 = arith.constant 0 : index
    %161 = vector.load %arg3[%c1_51, %c0_52, %c0_53] : memref<2x1x128xf32, #tpu.memory_space<vmem>>, vector<1x1x128xf32>
    %162 = vector.shape_cast %161 : vector<1x1x128xf32> to vector<1x128xf32>
    %c0_54 = arith.constant 0 : index
    %c0_55 = arith.constant 0 : index
    %163 = vector.load %arg7[%c0_54, %c0_55] : memref<16x32xf32, #tpu.memory_space<vmem>>, vector<16x32xf32>
    %cst_56 = arith.constant dense<0.000000e+00> : vector<16x128xf32>
    %164 = tpu.matmul %163, %160, %cst_56 {dimension_numbers = #tpu.dot_dimension_numbers<[1], [0], [0], [1], [0, 0, 1, 1], [], []>} : vector<16x32xf32>, vector<32x128xf32>, vector<16x128xf32> -> vector<16x128xf32>
    %165 = vector.broadcast %162 : vector<1x128xf32> to vector<16x128xf32>
    %166 = arith.addf %164, %165 : vector<16x128xf32>
    %c0_57 = arith.constant 0 : index
    %c0_58 = arith.constant 0 : index
    %167 = vector.load %arg8[%c0_57, %c0_58] : memref<16x128xf32, #tpu.memory_space<vmem>>, vector<16x128xf32>
    tpu.vector_store %arg8[%c0_57, %c0_58], %166 {strides = array<i32>} : memref<16x128xf32, #tpu.memory_space<vmem>>, vector<16x128xf32>,
    %c1_59 = arith.constant 1 : index
    %c0_60 = arith.constant 0 : index
    %c0_61 = arith.constant 0 : index
    %168 = vector.load %arg2[%c1_59, %c0_60, %c0_61] : memref<2x32x128xf32, #tpu.memory_space<vmem>>, vector<1x32x128xf32>
    %169 = vector.shape_cast %168 : vector<1x32x128xf32> to vector<32x128xf32>
    %c0_62 = arith.constant 0 : index
    %c0_63 = arith.constant 0 : index
    %170 = vector.load %arg8[%c0_62, %c0_63] : memref<16x128xf32, #tpu.memory_space<vmem>>, vector<2x128xf32>
    %171 = arith.negf %170 : vector<2x128xf32>
    %172 = math.exp %171 : vector<2x128xf32>
    %cst_64 = arith.constant 1.000000e+00 : f32
    %173 = vector.broadcast %cst_64 : f32 to vector<2x128xf32>
    %174 = arith.addf %173, %172 : vector<2x128xf32>
    %175 = arith.divf %173, %174 : vector<2x128xf32>
    %176 = math.tanh %170 : vector<2x128xf32>
    %177 = vector.extract_strided_slice %175 {offsets = [0, 0], sizes = [2, 32], strides = [1, 1]} : vector<2x128xf32> to vector<2x32xf32>
    %178 = vector.extract_strided_slice %176 {offsets = [0, 64], sizes = [2, 32], strides = [1, 1]} : vector<2x128xf32> to vector<2x32xf32>
    %179 = vector.extract_strided_slice %175 {offsets = [0, 96], sizes = [2, 32], strides = [1, 1]} : vector<2x128xf32> to vector<2x32xf32>
    %180 = arith.mulf %177, %178 : vector<2x32xf32>
    %181 = math.tanh %180 : vector<2x32xf32>
    %182 = arith.mulf %179, %181 : vector<2x32xf32>
    %c2_65 = arith.constant 2 : index
    %c0_66 = arith.constant 0 : index
    %183 = vector.load %arg8[%c2_65, %c0_66] : memref<16x128xf32, #tpu.memory_space<vmem>>, vector<2x128xf32>
    %cst_67 = arith.constant dense<0.000000e+00> : vector<2x128xf32>
    %184 = tpu.matmul %182, %169, %cst_67 {dimension_numbers = #tpu.dot_dimension_numbers<[1], [0], [0], [1], [0, 0, 1, 1], [], []>} : vector<2x32xf32>, vector<32x128xf32>, vector<2x128xf32> -> vector<2x128xf32>
    %185 = arith.addf %183, %184 : vector<2x128xf32>
    %186 = arith.negf %185 : vector<2x128xf32>
    %187 = math.exp %186 : vector<2x128xf32>
    %cst_68 = arith.constant 1.000000e+00 : f32
    %188 = vector.broadcast %cst_68 : f32 to vector<2x128xf32>
    %189 = arith.addf %188, %187 : vector<2x128xf32>
    %190 = arith.divf %188, %189 : vector<2x128xf32>
    %191 = math.tanh %185 : vector<2x128xf32>
    %192 = vector.extract_strided_slice %190 {offsets = [0, 0], sizes = [2, 32], strides = [1, 1]} : vector<2x128xf32> to vector<2x32xf32>
    %193 = vector.extract_strided_slice %190 {offsets = [0, 32], sizes = [2, 32], strides = [1, 1]} : vector<2x128xf32> to vector<2x32xf32>
    %194 = vector.extract_strided_slice %191 {offsets = [0, 64], sizes = [2, 32], strides = [1, 1]} : vector<2x128xf32> to vector<2x32xf32>
    %195 = vector.extract_strided_slice %190 {offsets = [0, 96], sizes = [2, 32], strides = [1, 1]} : vector<2x128xf32> to vector<2x32xf32>
    %196 = arith.mulf %193, %180 : vector<2x32xf32>
    %197 = arith.mulf %192, %194 : vector<2x32xf32>
    %198 = arith.addf %196, %197 : vector<2x32xf32>
    %199 = math.tanh %198 : vector<2x32xf32>
    %200 = arith.mulf %195, %199 : vector<2x32xf32>
    %c4_69 = arith.constant 4 : index
    %c0_70 = arith.constant 0 : index
    %201 = vector.load %arg8[%c4_69, %c0_70] : memref<16x128xf32, #tpu.memory_space<vmem>>, vector<2x128xf32>
    %cst_71 = arith.constant dense<0.000000e+00> : vector<2x128xf32>
    %202 = tpu.matmul %200, %169, %cst_71 {dimension_numbers = #tpu.dot_dimension_numbers<[1], [0], [0], [1], [0, 0, 1, 1], [], []>} : vector<2x32xf32>, vector<32x128xf32>, vector<2x128xf32> -> vector<2x128xf32>
    %203 = arith.addf %201, %202 : vector<2x128xf32>
    %204 = arith.negf %203 : vector<2x128xf32>
    %205 = math.exp %204 : vector<2x128xf32>
    %cst_72 = arith.constant 1.000000e+00 : f32
    %206 = vector.broadcast %cst_72 : f32 to vector<2x128xf32>
    %207 = arith.addf %206, %205 : vector<2x128xf32>
    %208 = arith.divf %206, %207 : vector<2x128xf32>
    %209 = math.tanh %203 : vector<2x128xf32>
    %210 = vector.extract_strided_slice %208 {offsets = [0, 0], sizes = [2, 32], strides = [1, 1]} : vector<2x128xf32> to vector<2x32xf32>
    %211 = vector.extract_strided_slice %208 {offsets = [0, 32], sizes = [2, 32], strides = [1, 1]} : vector<2x128xf32> to vector<2x32xf32>
    %212 = vector.extract_strided_slice %209 {offsets = [0, 64], sizes = [2, 32], strides = [1, 1]} : vector<2x128xf32> to vector<2x32xf32>
    %213 = vector.extract_strided_slice %208 {offsets = [0, 96], sizes = [2, 32], strides = [1, 1]} : vector<2x128xf32> to vector<2x32xf32>
    %214 = arith.mulf %211, %198 : vector<2x32xf32>
    %215 = arith.mulf %210, %212 : vector<2x32xf32>
    %216 = arith.addf %214, %215 : vector<2x32xf32>
    %217 = math.tanh %216 : vector<2x32xf32>
    %218 = arith.mulf %213, %217 : vector<2x32xf32>
    %c6_73 = arith.constant 6 : index
    %c0_74 = arith.constant 0 : index
    %219 = vector.load %arg8[%c6_73, %c0_74] : memref<16x128xf32, #tpu.memory_space<vmem>>, vector<2x128xf32>
    %cst_75 = arith.constant dense<0.000000e+00> : vector<2x128xf32>
    %220 = tpu.matmul %218, %169, %cst_75 {dimension_numbers = #tpu.dot_dimension_numbers<[1], [0], [0], [1], [0, 0, 1, 1], [], []>} : vector<2x32xf32>, vector<32x128xf32>, vector<2x128xf32> -> vector<2x128xf32>
    %221 = arith.addf %219, %220 : vector<2x128xf32>
    %222 = arith.negf %221 : vector<2x128xf32>
    %223 = math.exp %222 : vector<2x128xf32>
    %cst_76 = arith.constant 1.000000e+00 : f32
    %224 = vector.broadcast %cst_76 : f32 to vector<2x128xf32>
    %225 = arith.addf %224, %223 : vector<2x128xf32>
    %226 = arith.divf %224, %225 : vector<2x128xf32>
    %227 = math.tanh %221 : vector<2x128xf32>
    %228 = vector.extract_strided_slice %226 {offsets = [0, 0], sizes = [2, 32], strides = [1, 1]} : vector<2x128xf32> to vector<2x32xf32>
    %229 = vector.extract_strided_slice %226 {offsets = [0, 32], sizes = [2, 32], strides = [1, 1]} : vector<2x128xf32> to vector<2x32xf32>
    %230 = vector.extract_strided_slice %227 {offsets = [0, 64], sizes = [2, 32], strides = [1, 1]} : vector<2x128xf32> to vector<2x32xf32>
    %231 = vector.extract_strided_slice %226 {offsets = [0, 96], sizes = [2, 32], strides = [1, 1]} : vector<2x128xf32> to vector<2x32xf32>
    %232 = arith.mulf %229, %216 : vector<2x32xf32>
    %233 = arith.mulf %228, %230 : vector<2x32xf32>
    %234 = arith.addf %232, %233 : vector<2x32xf32>
    %235 = math.tanh %234 : vector<2x32xf32>
    %236 = arith.mulf %231, %235 : vector<2x32xf32>
    %c8_77 = arith.constant 8 : index
    %c0_78 = arith.constant 0 : index
    %237 = vector.load %arg8[%c8_77, %c0_78] : memref<16x128xf32, #tpu.memory_space<vmem>>, vector<2x128xf32>
    %cst_79 = arith.constant dense<0.000000e+00> : vector<2x128xf32>
    %238 = tpu.matmul %236, %169, %cst_79 {dimension_numbers = #tpu.dot_dimension_numbers<[1], [0], [0], [1], [0, 0, 1, 1], [], []>} : vector<2x32xf32>, vector<32x128xf32>, vector<2x128xf32> -> vector<2x128xf32>
    %239 = arith.addf %237, %238 : vector<2x128xf32>
    %240 = arith.negf %239 : vector<2x128xf32>
    %241 = math.exp %240 : vector<2x128xf32>
    %cst_80 = arith.constant 1.000000e+00 : f32
    %242 = vector.broadcast %cst_80 : f32 to vector<2x128xf32>
    %243 = arith.addf %242, %241 : vector<2x128xf32>
    %244 = arith.divf %242, %243 : vector<2x128xf32>
    %245 = math.tanh %239 : vector<2x128xf32>
    %246 = vector.extract_strided_slice %244 {offsets = [0, 0], sizes = [2, 32], strides = [1, 1]} : vector<2x128xf32> to vector<2x32xf32>
    %247 = vector.extract_strided_slice %244 {offsets = [0, 32], sizes = [2, 32], strides = [1, 1]} : vector<2x128xf32> to vector<2x32xf32>
    %248 = vector.extract_strided_slice %245 {offsets = [0, 64], sizes = [2, 32], strides = [1, 1]} : vector<2x128xf32> to vector<2x32xf32>
    %249 = vector.extract_strided_slice %244 {offsets = [0, 96], sizes = [2, 32], strides = [1, 1]} : vector<2x128xf32> to vector<2x32xf32>
    %250 = arith.mulf %247, %234 : vector<2x32xf32>
    %251 = arith.mulf %246, %248 : vector<2x32xf32>
    %252 = arith.addf %250, %251 : vector<2x32xf32>
    %253 = math.tanh %252 : vector<2x32xf32>
    %254 = arith.mulf %249, %253 : vector<2x32xf32>
    %c10_81 = arith.constant 10 : index
    %c0_82 = arith.constant 0 : index
    %255 = vector.load %arg8[%c10_81, %c0_82] : memref<16x128xf32, #tpu.memory_space<vmem>>, vector<2x128xf32>
    %cst_83 = arith.constant dense<0.000000e+00> : vector<2x128xf32>
    %256 = tpu.matmul %254, %169, %cst_83 {dimension_numbers = #tpu.dot_dimension_numbers<[1], [0], [0], [1], [0, 0, 1, 1], [], []>} : vector<2x32xf32>, vector<32x128xf32>, vector<2x128xf32> -> vector<2x128xf32>
    %257 = arith.addf %255, %256 : vector<2x128xf32>
    %258 = arith.negf %257 : vector<2x128xf32>
    %259 = math.exp %258 : vector<2x128xf32>
    %cst_84 = arith.constant 1.000000e+00 : f32
    %260 = vector.broadcast %cst_84 : f32 to vector<2x128xf32>
    %261 = arith.addf %260, %259 : vector<2x128xf32>
    %262 = arith.divf %260, %261 : vector<2x128xf32>
    %263 = math.tanh %257 : vector<2x128xf32>
    %264 = vector.extract_strided_slice %262 {offsets = [0, 0], sizes = [2, 32], strides = [1, 1]} : vector<2x128xf32> to vector<2x32xf32>
    %265 = vector.extract_strided_slice %262 {offsets = [0, 32], sizes = [2, 32], strides = [1, 1]} : vector<2x128xf32> to vector<2x32xf32>
    %266 = vector.extract_strided_slice %263 {offsets = [0, 64], sizes = [2, 32], strides = [1, 1]} : vector<2x128xf32> to vector<2x32xf32>
    %267 = vector.extract_strided_slice %262 {offsets = [0, 96], sizes = [2, 32], strides = [1, 1]} : vector<2x128xf32> to vector<2x32xf32>
    %268 = arith.mulf %265, %252 : vector<2x32xf32>
    %269 = arith.mulf %264, %266 : vector<2x32xf32>
    %270 = arith.addf %268, %269 : vector<2x32xf32>
    %271 = math.tanh %270 : vector<2x32xf32>
    %272 = arith.mulf %267, %271 : vector<2x32xf32>
    %c12_85 = arith.constant 12 : index
    %c0_86 = arith.constant 0 : index
    %273 = vector.load %arg8[%c12_85, %c0_86] : memref<16x128xf32, #tpu.memory_space<vmem>>, vector<2x128xf32>
    %cst_87 = arith.constant dense<0.000000e+00> : vector<2x128xf32>
    %274 = tpu.matmul %272, %169, %cst_87 {dimension_numbers = #tpu.dot_dimension_numbers<[1], [0], [0], [1], [0, 0, 1, 1], [], []>} : vector<2x32xf32>, vector<32x128xf32>, vector<2x128xf32> -> vector<2x128xf32>
    %275 = arith.addf %273, %274 : vector<2x128xf32>
    %276 = arith.negf %275 : vector<2x128xf32>
    %277 = math.exp %276 : vector<2x128xf32>
    %cst_88 = arith.constant 1.000000e+00 : f32
    %278 = vector.broadcast %cst_88 : f32 to vector<2x128xf32>
    %279 = arith.addf %278, %277 : vector<2x128xf32>
    %280 = arith.divf %278, %279 : vector<2x128xf32>
    %281 = math.tanh %275 : vector<2x128xf32>
    %282 = vector.extract_strided_slice %280 {offsets = [0, 0], sizes = [2, 32], strides = [1, 1]} : vector<2x128xf32> to vector<2x32xf32>
    %283 = vector.extract_strided_slice %280 {offsets = [0, 32], sizes = [2, 32], strides = [1, 1]} : vector<2x128xf32> to vector<2x32xf32>
    %284 = vector.extract_strided_slice %281 {offsets = [0, 64], sizes = [2, 32], strides = [1, 1]} : vector<2x128xf32> to vector<2x32xf32>
    %285 = vector.extract_strided_slice %280 {offsets = [0, 96], sizes = [2, 32], strides = [1, 1]} : vector<2x128xf32> to vector<2x32xf32>
    %286 = arith.mulf %283, %270 : vector<2x32xf32>
    %287 = arith.mulf %282, %284 : vector<2x32xf32>
    %288 = arith.addf %286, %287 : vector<2x32xf32>
    %289 = math.tanh %288 : vector<2x32xf32>
    %290 = arith.mulf %285, %289 : vector<2x32xf32>
    %c14_89 = arith.constant 14 : index
    %c0_90 = arith.constant 0 : index
    %291 = vector.load %arg8[%c14_89, %c0_90] : memref<16x128xf32, #tpu.memory_space<vmem>>, vector<2x128xf32>
    %cst_91 = arith.constant dense<0.000000e+00> : vector<2x128xf32>
    %292 = tpu.matmul %290, %169, %cst_91 {dimension_numbers = #tpu.dot_dimension_numbers<[1], [0], [0], [1], [0, 0, 1, 1], [], []>} : vector<2x32xf32>, vector<32x128xf32>, vector<2x128xf32> -> vector<2x128xf32>
    %293 = arith.addf %291, %292 : vector<2x128xf32>
    %294 = arith.negf %293 : vector<2x128xf32>
    %295 = math.exp %294 : vector<2x128xf32>
    %cst_92 = arith.constant 1.000000e+00 : f32
    %296 = vector.broadcast %cst_92 : f32 to vector<2x128xf32>
    %297 = arith.addf %296, %295 : vector<2x128xf32>
    %298 = arith.divf %296, %297 : vector<2x128xf32>
    %299 = math.tanh %293 : vector<2x128xf32>
    %300 = vector.extract_strided_slice %298 {offsets = [0, 0], sizes = [2, 32], strides = [1, 1]} : vector<2x128xf32> to vector<2x32xf32>
    %301 = vector.extract_strided_slice %298 {offsets = [0, 32], sizes = [2, 32], strides = [1, 1]} : vector<2x128xf32> to vector<2x32xf32>
    %302 = vector.extract_strided_slice %299 {offsets = [0, 64], sizes = [2, 32], strides = [1, 1]} : vector<2x128xf32> to vector<2x32xf32>
    %303 = vector.extract_strided_slice %298 {offsets = [0, 96], sizes = [2, 32], strides = [1, 1]} : vector<2x128xf32> to vector<2x32xf32>
    %304 = arith.mulf %301, %288 : vector<2x32xf32>
    %305 = arith.mulf %300, %302 : vector<2x32xf32>
    %306 = arith.addf %304, %305 : vector<2x32xf32>
    %307 = math.tanh %306 : vector<2x32xf32>
    %308 = arith.mulf %303, %307 : vector<2x32xf32>
    %c0_93 = arith.constant 0 : index
    %c0_94 = arith.constant 0 : index
    %309 = vector.load %arg4[%c0_93, %c0_94] : memref<32x8xf32, #tpu.memory_space<vmem>>, vector<32x8xf32>
    %cst_95 = arith.constant dense<0.000000e+00> : vector<2x8xf32>
    %310 = tpu.matmul %308, %309, %cst_95 {dimension_numbers = #tpu.dot_dimension_numbers<[1], [0], [0], [1], [0, 0, 1, 1], [], []>} : vector<2x32xf32>, vector<32x8xf32>, vector<2x8xf32> -> vector<2x8xf32>
    %c0_96 = arith.constant 0 : index
    %c0_97 = arith.constant 0 : index
    %311 = vector.load %arg5[%c0_96, %c0_97] : memref<1x8xf32, #tpu.memory_space<vmem>>, vector<1x8xf32>
    %312 = vector.broadcast %311 : vector<1x8xf32> to vector<2x8xf32>
    %313 = arith.addf %310, %312 : vector<2x8xf32>
    %c0_98 = arith.constant 0 : index
    %c0_99 = arith.constant 0 : index
    %314 = vector.load %arg6[%c0_98, %c0_99] : memref<2x8xf32, #tpu.memory_space<vmem>>, vector<2x8xf32>
    tpu.vector_store %arg6[%c0_98, %c0_99], %313 {strides = array<i32>} : memref<2x8xf32, #tpu.memory_space<vmem>>, vector<2x8xf32>,
    return
  }
}

</mosaic_0001>

<llo_original>
// kernel: simple_lstm_forward.1
$region0: #{simple_lstm_forward.1}
  #allocation0 [shape = 'u32[]', space=smem, size = 0x4, offset = 0x4, fixed_abs, tag = 'smem constant byte address 0x4 - core index']
  #allocation1 [shape = 'u32[72,128]{1,0:T(1,128)}', space=vmem, size = 0x9000, scoped, tag = 'internal scratch']
  #allocation2 [shape = 'f32[16,32]{1,0:T(8,128)}', space=vmem, size = 0x2000, scoped, tag = 'scratch operand']
  #allocation3 [shape = 'f32[16,128]{1,0:T(8,128)}', space=vmem, size = 0x2000, scoped, tag = 'scratch operand']
  %s0 = inlined_call_operand.vmem [shape: f32[16,16], index: 0, kind: input, shape index: {}]
  %s1 = inlined_call_operand.hbm [shape: f32[2,32,128], index: 1, kind: input, shape index: {}]
  %s2 = inlined_call_operand.hbm [shape: f32[2,32,128], index: 2, kind: input, shape index: {}]
  %s3 = inlined_call_operand.vmem [shape: f32[2,1,128], index: 3, kind: input, shape index: {}]
  %s4 = inlined_call_operand.vmem [shape: f32[32,8], index: 4, kind: input, shape index: {}]
  %s5 = inlined_call_operand.vmem [shape: f32[1,8], index: 5, kind: input, shape index: {}]
  %s6 = inlined_call_operand.hbm [shape: f32[2,8], index: 6, kind: output, shape index: {}]
  %s7 = sld [smem:[#allocation0]]
  $region42: #{simple_lstm_forward.1} parent=0
    _
  %s9 = ssub.s32 1, %s7
  %s10 = scalar_select 0, %s9, %s7
  $region1: #{simple_lstm_forward.1} parent=0
    #allocation4 [shape = 'u8[32768]{0}', space=vmem, size = 0x8000, scoped, tag = 'input window, operand 1, single buffered']
    #allocation5 [shape = 's32[1]{0}', space=sflag, size = 0x4, scoped, tag = 'scoped memory for simple_lstm_forward.1']
    #allocation6 [shape = 's32[1]{0}', space=sflag, size = 0x4, scoped, tag = 'scoped memory for simple_lstm_forward.1']
    #allocation7 [shape = 'u8[32768]{0}', space=vmem, size = 0x8000, scoped, tag = 'input window, operand 2, single buffered']
    #allocation8 [shape = 's32[1]{0}', space=sflag, size = 0x4, scoped, tag = 'scoped memory for simple_lstm_forward.1']
    #allocation9 [shape = 'u8[1024]{0}', space=vmem, size = 0x400, scoped, tag = 'output window, operand 0, single buffered']
    %11 = vsyncpa [#allocation5], 0
    %12 = vsyncpa [#allocation8], 0
    %13 = vsyncpa [#allocation6], 0
    // Predicated region
    $region2: #{simple_lstm_forward.1} parent=1 // pred_check
      _
    $region3: #{simple_lstm_forward.1} parent=1 // pred_check_branch
      %15 = sbr.rel (0) target = $region5
    $region4: #{simple_lstm_forward.1} parent=1 // pred_region
      _
    $region5: #{simple_lstm_forward.1} parent=1 // pred_fallthru
      _
    // Predicated region
    $region6: #{simple_lstm_forward.1} parent=1 // pred_check
      _
    $region7: #{simple_lstm_forward.1} parent=1 // pred_check_branch
      %17 = sbr.rel (0) target = $region9
    $region8: #{simple_lstm_forward.1} parent=1 // pred_region
      %19 = vsyncadd [#allocation5], 0
      %s20 = sshll.u32 %s1, 4
      %s21 = int_to_ptr.hbm [resolvable:$true] %s20
      %s22 = sshll.u32 [#allocation4], 4
      %s23 = int_to_ptr.vmem [resolvable:$true] %s22
      %28 = dma.hbm_to_vmem [thread:$0]  %s21, 1024, %s23, [#allocation5], 128, 128, 8
    $region9: #{simple_lstm_forward.1} parent=1 // pred_fallthru
      _
    // Predicated region
    $region10: #{simple_lstm_forward.1} parent=1 // pred_check
      _
    $region11: #{simple_lstm_forward.1} parent=1 // pred_check_branch
      %30 = sbr.rel (0) target = $region13
    $region12: #{simple_lstm_forward.1} parent=1 // pred_region
      %32 = vsyncadd [#allocation8], 0
      %s33 = sshll.u32 %s2, 4
      %s34 = int_to_ptr.hbm [resolvable:$true] %s33
      %s35 = sshll.u32 [#allocation7], 4
      %s36 = int_to_ptr.vmem [resolvable:$true] %s35
      %41 = dma.hbm_to_vmem [thread:$0]  %s34, 1024, %s36, [#allocation8], 128, 128, 8
    $region13: #{simple_lstm_forward.1} parent=1 // pred_fallthru
      _
    // Predicated region
    $region14: #{simple_lstm_forward.1} parent=1 // pred_check
      _
    $region15: #{simple_lstm_forward.1} parent=1 // pred_check_branch
      %43 = sbr.rel (0) target = $region17
    $region16: #{simple_lstm_forward.1} parent=1 // pred_region
      _
    $region17: #{simple_lstm_forward.1} parent=1 // pred_fallthru
      _
    // Predicated region
    $region18: #{simple_lstm_forward.1} parent=1 // pred_check
      _
    $region19: #{simple_lstm_forward.1} parent=1 // pred_check_branch
      %45 = sbr.rel (0) target = $region21
    $region20: #{simple_lstm_forward.1} parent=1 // pred_region
      _
    $region21: #{simple_lstm_forward.1} parent=1 // pred_fallthru
      _
    // Predicated region
    $region22: #{simple_lstm_forward.1} parent=1 // pred_check
      _
    $region23: #{simple_lstm_forward.1} parent=1 // pred_check_branch
      %47 = sbr.rel (0) target = $region25
    $region24: #{simple_lstm_forward.1} parent=1 // pred_region
      _
    $region25: #{simple_lstm_forward.1} parent=1 // pred_fallthru
      _
    // Predicated region
    $region26: #{simple_lstm_forward.1} parent=1 // pred_check
      _
    $region27: #{simple_lstm_forward.1} parent=1 // pred_check_branch
      %49 = sbr.rel (0) target = $region29
    $region28: #{simple_lstm_forward.1} parent=1 // pred_region
      %51 = dma.done [#allocation5], 1024
    $region29: #{simple_lstm_forward.1} parent=1 // pred_fallthru
      _
    // Predicated region
    $region30: #{simple_lstm_forward.1} parent=1 // pred_check
      _
    $region31: #{simple_lstm_forward.1} parent=1 // pred_check_branch
      %53 = sbr.rel (0) target = $region33
    $region32: #{simple_lstm_forward.1} parent=1 // pred_region
      %55 = dma.done [#allocation8], 1024
    $region33: #{simple_lstm_forward.1} parent=1 // pred_fallthru
      _
    %v56 = vld [vmem:[#allocation4] sm:$0xff]
    %v57 = vld [vmem:[#allocation4 + $0x8] sm:$0xff]
    %v58 = vld [vmem:[%s3] sm:$0x1]
    %v59 = vld [vmem:[%s0] sm:$0xff]
    %v60 = vld [vmem:[%s0 + $0x8] sm:$0xff]
    %v62 = vperm.slane %v58, 0
    %vm64 = vcmask 130048
    %v66 = vsel %vm64, %v59, 0
    %v69 = vsel %vm64, %v60, 0
    %71 = vmatpush.msra.mxu0 0.0
    %72 = vmatpush.msra.mxu0 0.0
    %73 = vmatpush.msra.mxu0 0.0
    %74 = vmatpush.msra.mxu0 0.0
    %75 = vmatpush.msra.mxu0 0.0
    %76 = vmatpush.msra.mxu0 0.0
    %77 = vmatpush.msra.mxu0 0.0
    %78 = vmatpush.msra.mxu0 0.0
    %79 = vmatpush.msra.mxu0 0.0
    %80 = vmatpush.msra.mxu0 0.0
    %81 = vmatpush.msra.mxu0 0.0
    %82 = vmatpush.msra.mxu0 0.0
    %83 = vmatpush.msra.mxu0 0.0
    %84 = vmatpush.msra.mxu0 0.0
    %85 = vmatpush.msra.mxu0 %v57
    %86 = vmatpush.msra.mxu0 %v56
    %87 = vmatmul.f32.gmra.mxu0 %v66
    %v88 = vpop.f32.mrf.mxu0
    %v89 = vadd.f32 %v62, %v88
    %90 = vmatmul.f32.gmra.mxu0 %v69
    %v91 = vpop.f32.mrf.mxu0
    %v92 = vadd.f32 %v62, %v91
    %93 = vdwg.mxu0
    %94 = vst [vmem:[#allocation3] sm:$0xff] %v89
    %95 = vst [vmem:[#allocation3 + $0x8] sm:$0xff] %v92
    %v96 = vld [vmem:[#allocation7] sm:$0xff]
    %v97 = vld [vmem:[#allocation7 + $0x8] sm:$0xff]
    %v98 = vld [vmem:[#allocation7 + $0x10] sm:$0xff]
    %v99 = vld [vmem:[#allocation7 + $0x18] sm:$0xff]
    %v100 = vld [vmem:[#allocation3] ss:$8 sm:$0x3]
    %v101 = vxor.u32 %v100, 2147483648
    %v102 = vmul.f32 %v101, 1.442695
    %v103 = vpow.pop %v102
    %v104 = vadd.f32 %v103, 1.0
    %v105 = vrcp.pop %v104
    %v106 = vmul.f32 %v104, %v105
    %v107 = vsub.f32 1.0, %v106
    %v108 = vmul.f32 %v105, %v107
    %v109 = vadd.f32 %v105, %v108
    %vm110 = vweird.f32 %v104
    %vm111 = vweird.f32 %v105
    %vm112 = vmor %vm110, %vm111
    %v113 = vsel %vm112, %v105, %v109
    %v114 = vand.u32 2147483647, %v104
    %vm115 = vcmp.eq.f32.partialorder %v114, 8.507059e+37
    %v116 = vand.u32 %v104, 2147483648
    %v117 = vor.u32 1.1754944e-38, %v116
    %v118 = vsel %vm115, %v117, %v113
    %v119 = vmul.f32 1.0, %v118
    %v120 = vtanh.pop %v100
    %122 = vrot.lane.b32.xlu0 %v120, 64
    %v123 = vpop.permute.xlu0 %122
    %v125 = vmul.f32 %v119, %v123
    %v126 = vtanh.pop %v125
    %128 = vrot.lane.b32.xlu0 %v126, 96
    %v129 = vpop.permute.xlu0 %128
    %v131 = vmul.f32 %v119, %v129
    %133 = vrot.lane.b32.xlu0 %v131, 32
    %v134 = vpop.permute.xlu0 %133
    %vm136 = vcmask 254976
    %137 = vst.msk [vmem:[#allocation2] sm:$0x3] %vm136, %v134
    %s138 = scalar_lea.vmem [#allocation3], 1
    %v139 = vld [vmem:[%s138] ss:$8 sm:$0x3]
    %vm140 = vcmask 261120
    %v141 = vsel %vm140, %v134, 0
    %143 = vmatpush.msra.mxu0 0.0
    %144 = vmatpush.msra.mxu0 0.0
    %145 = vmatpush.msra.mxu0 0.0
    %146 = vmatpush.msra.mxu0 0.0
    %147 = vmatpush.msra.mxu0 0.0
    %148 = vmatpush.msra.mxu0 0.0
    %149 = vmatpush.msra.mxu0 0.0
    %150 = vmatpush.msra.mxu0 0.0
    %151 = vmatpush.msra.mxu0 0.0
    %152 = vmatpush.msra.mxu0 0.0
    %153 = vmatpush.msra.mxu0 0.0
    %154 = vmatpush.msra.mxu0 0.0
    %155 = vmatpush.msra.mxu0 %v99
    %156 = vmatpush.msra.mxu0 %v98
    %157 = vmatpush.msra.mxu0 %v97
    %158 = vmatpush.msra.mxu0 %v96
    %159 = vmatmul.f32.gmra.mxu0 %v141
    %v160 = vpop.f32.mrf.mxu0
    %v161 = vadd.f32 0.0, %v160
    %162 = vdwg.mxu0
    %v163 = vadd.f32 %v139, %v161
    %v164 = vxor.u32 %v163, 2147483648
    %v165 = vmul.f32 %v164, 1.442695
    %v166 = vpow.pop %v165
    %v167 = vadd.f32 %v166, 1.0
    %v168 = vrcp.pop %v167
    %v169 = vmul.f32 %v167, %v168
    %v170 = vsub.f32 1.0, %v169
    %v171 = vmul.f32 %v168, %v170
    %v172 = vadd.f32 %v168, %v171
    %vm173 = vweird.f32 %v167
    %vm174 = vweird.f32 %v168
    %vm175 = vmor %vm173, %vm174
    %v176 = vsel %vm175, %v168, %v172
    %v177 = vand.u32 2147483647, %v167
    %vm178 = vcmp.eq.f32.partialorder %v177, 8.507059e+37
    %v179 = vand.u32 %v167, 2147483648
    %v180 = vor.u32 1.1754944e-38, %v179
    %v181 = vsel %vm178, %v180, %v176
    %v182 = vmul.f32 1.0, %v181
    %v183 = vtanh.pop %v163
    %185 = vrot.lane.b32.xlu0 %v125, 32
    %v186 = vpop.permute.xlu0 %185
    %v188 = vmul.f32 %v182, %v186
    %190 = vrot.lane.b32.xlu0 %v183, 64
    %v191 = vpop.permute.xlu0 %190
    %v193 = vmul.f32 %v182, %v191
    %195 = vrot.lane.b32.xlu0 %v193, 32
    %v196 = vpop.permute.xlu0 %195
    %v198 = vadd.f32 %v188, %v196
    %v199 = vtanh.pop %v198
    %201 = vrot.lane.b32.xlu0 %v199, 64
    %v202 = vpop.permute.xlu0 %201
    %v204 = vmul.f32 %v182, %v202
    %206 = vrot.lane.b32.xlu0 %v204, 32
    %v207 = vpop.permute.xlu0 %206
    %209 = vst.msk [vmem:[#allocation2 + $0x2] sm:$0x3] %vm136, %v207
    %s210 = scalar_lea.vmem [#allocation3], 2
    %v211 = vld [vmem:[%s210] ss:$8 sm:$0x3]
    %v212 = vsel %vm140, %v207, 0
    %214 = vmatpush.msra.mxu0 0.0
    %215 = vmatpush.msra.mxu0 0.0
    %216 = vmatpush.msra.mxu0 0.0
    %217 = vmatpush.msra.mxu0 0.0
    %218 = vmatpush.msra.mxu0 0.0
    %219 = vmatpush.msra.mxu0 0.0
    %220 = vmatpush.msra.mxu0 0.0
    %221 = vmatpush.msra.mxu0 0.0
    %222 = vmatpush.msra.mxu0 0.0
    %223 = vmatpush.msra.mxu0 0.0
    %224 = vmatpush.msra.mxu0 0.0
    %225 = vmatpush.msra.mxu0 0.0
    %226 = vmatpush.msra.mxu0 %v99
    %227 = vmatpush.msra.mxu0 %v98
    %228 = vmatpush.msra.mxu0 %v97
    %229 = vmatpush.msra.mxu0 %v96
    %230 = vmatmul.f32.gmra.mxu0 %v212
    %v231 = vpop.f32.mrf.mxu0
    %v232 = vadd.f32 0.0, %v231
    %233 = vdwg.mxu0
    %v234 = vadd.f32 %v211, %v232
    %v235 = vxor.u32 %v234, 2147483648
    %v236 = vmul.f32 %v235, 1.442695
    %v237 = vpow.pop %v236
    %v238 = vadd.f32 %v237, 1.0
    %v239 = vrcp.pop %v238
    %v240 = vmul.f32 %v238, %v239
    %v241 = vsub.f32 1.0, %v240
    %v242 = vmul.f32 %v239, %v241
    %v243 = vadd.f32 %v239, %v242
    %vm244 = vweird.f32 %v238
    %vm245 = vweird.f32 %v239
    %vm246 = vmor %vm244, %vm245
    %v247 = vsel %vm246, %v239, %v243
    %v248 = vand.u32 2147483647, %v238
    %vm249 = vcmp.eq.f32.partialorder %v248, 8.507059e+37
    %v250 = vand.u32 %v238, 2147483648
    %v251 = vor.u32 1.1754944e-38, %v250
    %v252 = vsel %vm249, %v251, %v247
    %v253 = vmul.f32 1.0, %v252
    %v254 = vtanh.pop %v234
    %v255 = vmul.f32 %v253, %v198
    %257 = vrot.lane.b32.xlu0 %v254, 64
    %v258 = vpop.permute.xlu0 %257
    %v260 = vmul.f32 %v253, %v258
    %262 = vrot.lane.b32.xlu0 %v260, 32
    %v263 = vpop.permute.xlu0 %262
    %v265 = vadd.f32 %v255, %v263
    %v266 = vtanh.pop %v265
    %268 = vrot.lane.b32.xlu0 %v266, 64
    %v269 = vpop.permute.xlu0 %268
    %v271 = vmul.f32 %v253, %v269
    %273 = vrot.lane.b32.xlu0 %v271, 32
    %v274 = vpop.permute.xlu0 %273
    %276 = vst.msk [vmem:[#allocation2 + $0x4] sm:$0x3] %vm136, %v274
    %s277 = scalar_lea.vmem [#allocation3], 3
    %v278 = vld [vmem:[%s277] ss:$8 sm:$0x3]
    %v279 = vsel %vm140, %v274, 0
    %281 = vmatpush.msra.mxu0 0.0
    %282 = vmatpush.msra.mxu0 0.0
    %283 = vmatpush.msra.mxu0 0.0
    %284 = vmatpush.msra.mxu0 0.0
    %285 = vmatpush.msra.mxu0 0.0
    %286 = vmatpush.msra.mxu0 0.0
    %287 = vmatpush.msra.mxu0 0.0
    %288 = vmatpush.msra.mxu0 0.0
    %289 = vmatpush.msra.mxu0 0.0
    %290 = vmatpush.msra.mxu0 0.0
    %291 = vmatpush.msra.mxu0 0.0
    %292 = vmatpush.msra.mxu0 0.0
    %293 = vmatpush.msra.mxu0 %v99
    %294 = vmatpush.msra.mxu0 %v98
    %295 = vmatpush.msra.mxu0 %v97
    %296 = vmatpush.msra.mxu0 %v96
    %297 = vmatmul.f32.gmra.mxu0 %v279
    %v298 = vpop.f32.mrf.mxu0
    %v299 = vadd.f32 0.0, %v298
    %300 = vdwg.mxu0
    %v301 = vadd.f32 %v278, %v299
    %v302 = vxor.u32 %v301, 2147483648
    %v303 = vmul.f32 %v302, 1.442695
    %v304 = vpow.pop %v303
    %v305 = vadd.f32 %v304, 1.0
    %v306 = vrcp.pop %v305
    %v307 = vmul.f32 %v305, %v306
    %v308 = vsub.f32 1.0, %v307
    %v309 = vmul.f32 %v306, %v308
    %v310 = vadd.f32 %v306, %v309
    %vm311 = vweird.f32 %v305
    %vm312 = vweird.f32 %v306
    %vm313 = vmor %vm311, %vm312
    %v314 = vsel %vm313, %v306, %v310
    %v315 = vand.u32 2147483647, %v305
    %vm316 = vcmp.eq.f32.partialorder %v315, 8.507059e+37
    %v317 = vand.u32 %v305, 2147483648
    %v318 = vor.u32 1.1754944e-38, %v317
    %v319 = vsel %vm316, %v318, %v314
    %v320 = vmul.f32 1.0, %v319
    %v321 = vtanh.pop %v301
    %v322 = vmul.f32 %v320, %v265
    %324 = vrot.lane.b32.xlu0 %v321, 64
    %v325 = vpop.permute.xlu0 %324
    %v327 = vmul.f32 %v320, %v325
    %329 = vrot.lane.b32.xlu0 %v327, 32
    %v330 = vpop.permute.xlu0 %329
    %v332 = vadd.f32 %v322, %v330
    %v333 = vtanh.pop %v332
    %335 = vrot.lane.b32.xlu0 %v333, 64
    %v336 = vpop.permute.xlu0 %335
    %v338 = vmul.f32 %v320, %v336
    %340 = vrot.lane.b32.xlu0 %v338, 32
    %v341 = vpop.permute.xlu0 %340
    %343 = vst.msk [vmem:[#allocation2 + $0x6] sm:$0x3] %vm136, %v341
    %s344 = scalar_lea.vmem [#allocation3], 4
    %v345 = vld [vmem:[%s344] ss:$8 sm:$0x3]
    %v346 = vsel %vm140, %v341, 0
    %348 = vmatpush.msra.mxu0 0.0
    %349 = vmatpush.msra.mxu0 0.0
    %350 = vmatpush.msra.mxu0 0.0
    %351 = vmatpush.msra.mxu0 0.0
    %352 = vmatpush.msra.mxu0 0.0
    %353 = vmatpush.msra.mxu0 0.0
    %354 = vmatpush.msra.mxu0 0.0
    %355 = vmatpush.msra.mxu0 0.0
    %356 = vmatpush.msra.mxu0 0.0
    %357 = vmatpush.msra.mxu0 0.0
    %358 = vmatpush.msra.mxu0 0.0
    %359 = vmatpush.msra.mxu0 0.0
    %360 = vmatpush.msra.mxu0 %v99
    %361 = vmatpush.msra.mxu0 %v98
    %362 = vmatpush.msra.mxu0 %v97
    %363 = vmatpush.msra.mxu0 %v96
    %364 = vmatmul.f32.gmra.mxu0 %v346
    %v365 = vpop.f32.mrf.mxu0
    %v366 = vadd.f32 0.0, %v365
    %367 = vdwg.mxu0
    %v368 = vadd.f32 %v345, %v366
    %v369 = vxor.u32 %v368, 2147483648
    %v370 = vmul.f32 %v369, 1.442695
    %v371 = vpow.pop %v370
    %v372 = vadd.f32 %v371, 1.0
    %v373 = vrcp.pop %v372
    %v374 = vmul.f32 %v372, %v373
    %v375 = vsub.f32 1.0, %v374
    %v376 = vmul.f32 %v373, %v375
    %v377 = vadd.f32 %v373, %v376
    %vm378 = vweird.f32 %v372
    %vm379 = vweird.f32 %v373
    %vm380 = vmor %vm378, %vm379
    %v381 = vsel %vm380, %v373, %v377
    %v382 = vand.u32 2147483647, %v372
    %vm383 = vcmp.eq.f32.partialorder %v382, 8.507059e+37
    %v384 = vand.u32 %v372, 2147483648
    %v385 = vor.u32 1.1754944e-38, %v384
    %v386 = vsel %vm383, %v385, %v381
    %v387 = vmul.f32 1.0, %v386
    %v388 = vtanh.pop %v368
    %v389 = vmul.f32 %v387, %v332
    %391 = vrot.lane.b32.xlu0 %v388, 64
    %v392 = vpop.permute.xlu0 %391
    %v394 = vmul.f32 %v387, %v392
    %396 = vrot.lane.b32.xlu0 %v394, 32
    %v397 = vpop.permute.xlu0 %396
    %v399 = vadd.f32 %v389, %v397
    %v400 = vtanh.pop %v399
    %402 = vrot.lane.b32.xlu0 %v400, 64
    %v403 = vpop.permute.xlu0 %402
    %v405 = vmul.f32 %v387, %v403
    %407 = vrot.lane.b32.xlu0 %v405, 32
    %v408 = vpop.permute.xlu0 %407
    %410 = vst.msk [vmem:[#allocation2 + $0x8] sm:$0x3] %vm136, %v408
    %s411 = scalar_lea.vmem [#allocation3], 5
    %v412 = vld [vmem:[%s411] ss:$8 sm:$0x3]
    %v413 = vsel %vm140, %v408, 0
    %415 = vmatpush.msra.mxu0 0.0
    %416 = vmatpush.msra.mxu0 0.0
    %417 = vmatpush.msra.mxu0 0.0
    %418 = vmatpush.msra.mxu0 0.0
    %419 = vmatpush.msra.mxu0 0.0
    %420 = vmatpush.msra.mxu0 0.0
    %421 = vmatpush.msra.mxu0 0.0
    %422 = vmatpush.msra.mxu0 0.0
    %423 = vmatpush.msra.mxu0 0.0
    %424 = vmatpush.msra.mxu0 0.0
    %425 = vmatpush.msra.mxu0 0.0
    %426 = vmatpush.msra.mxu0 0.0
    %427 = vmatpush.msra.mxu0 %v99
    %428 = vmatpush.msra.mxu0 %v98
    %429 = vmatpush.msra.mxu0 %v97
    %430 = vmatpush.msra.mxu0 %v96
    %431 = vmatmul.f32.gmra.mxu0 %v413
    %v432 = vpop.f32.mrf.mxu0
    %v433 = vadd.f32 0.0, %v432
    %434 = vdwg.mxu0
    %v435 = vadd.f32 %v412, %v433
    %v436 = vxor.u32 %v435, 2147483648
    %v437 = vmul.f32 %v436, 1.442695
    %v438 = vpow.pop %v437
    %v439 = vadd.f32 %v438, 1.0
    %v440 = vrcp.pop %v439
    %v441 = vmul.f32 %v439, %v440
    %v442 = vsub.f32 1.0, %v441
    %v443 = vmul.f32 %v440, %v442
    %v444 = vadd.f32 %v440, %v443
    %vm445 = vweird.f32 %v439
    %vm446 = vweird.f32 %v440
    %vm447 = vmor %vm445, %vm446
    %v448 = vsel %vm447, %v440, %v444
    %v449 = vand.u32 2147483647, %v439
    %vm450 = vcmp.eq.f32.partialorder %v449, 8.507059e+37
    %v451 = vand.u32 %v439, 2147483648
    %v452 = vor.u32 1.1754944e-38, %v451
    %v453 = vsel %vm450, %v452, %v448
    %v454 = vmul.f32 1.0, %v453
    %v455 = vtanh.pop %v435
    %v456 = vmul.f32 %v454, %v399
    %458 = vrot.lane.b32.xlu0 %v455, 64
    %v459 = vpop.permute.xlu0 %458
    %v461 = vmul.f32 %v454, %v459
    %463 = vrot.lane.b32.xlu0 %v461, 32
    %v464 = vpop.permute.xlu0 %463
    %v466 = vadd.f32 %v456, %v464
    %v467 = vtanh.pop %v466
    %469 = vrot.lane.b32.xlu0 %v467, 64
    %v470 = vpop.permute.xlu0 %469
    %v472 = vmul.f32 %v454, %v470
    %474 = vrot.lane.b32.xlu0 %v472, 32
    %v475 = vpop.permute.xlu0 %474
    %477 = vst.msk [vmem:[#allocation2 + $0xa] sm:$0x3] %vm136, %v475
    %s478 = scalar_lea.vmem [#allocation3], 6
    %v479 = vld [vmem:[%s478] ss:$8 sm:$0x3]
    %v480 = vsel %vm140, %v475, 0
    %482 = vmatpush.msra.mxu0 0.0
    %483 = vmatpush.msra.mxu0 0.0
    %484 = vmatpush.msra.mxu0 0.0
    %485 = vmatpush.msra.mxu0 0.0
    %486 = vmatpush.msra.mxu0 0.0
    %487 = vmatpush.msra.mxu0 0.0
    %488 = vmatpush.msra.mxu0 0.0
    %489 = vmatpush.msra.mxu0 0.0
    %490 = vmatpush.msra.mxu0 0.0
    %491 = vmatpush.msra.mxu0 0.0
    %492 = vmatpush.msra.mxu0 0.0
    %493 = vmatpush.msra.mxu0 0.0
    %494 = vmatpush.msra.mxu0 %v99
    %495 = vmatpush.msra.mxu0 %v98
    %496 = vmatpush.msra.mxu0 %v97
    %497 = vmatpush.msra.mxu0 %v96
    %498 = vmatmul.f32.gmra.mxu0 %v480
    %v499 = vpop.f32.mrf.mxu0
    %v500 = vadd.f32 0.0, %v499
    %501 = vdwg.mxu0
    %v502 = vadd.f32 %v479, %v500
    %v503 = vxor.u32 %v502, 2147483648
    %v504 = vmul.f32 %v503, 1.442695
    %v505 = vpow.pop %v504
    %v506 = vadd.f32 %v505, 1.0
    %v507 = vrcp.pop %v506
    %v508 = vmul.f32 %v506, %v507
    %v509 = vsub.f32 1.0, %v508
    %v510 = vmul.f32 %v507, %v509
    %v511 = vadd.f32 %v507, %v510
    %vm512 = vweird.f32 %v506
    %vm513 = vweird.f32 %v507
    %vm514 = vmor %vm512, %vm513
    %v515 = vsel %vm514, %v507, %v511
    %v516 = vand.u32 2147483647, %v506
    %vm517 = vcmp.eq.f32.partialorder %v516, 8.507059e+37
    %v518 = vand.u32 %v506, 2147483648
    %v519 = vor.u32 1.1754944e-38, %v518
    %v520 = vsel %vm517, %v519, %v515
    %v521 = vmul.f32 1.0, %v520
    %v522 = vtanh.pop %v502
    %v523 = vmul.f32 %v521, %v466
    %525 = vrot.lane.b32.xlu0 %v522, 64
    %v526 = vpop.permute.xlu0 %525
    %v528 = vmul.f32 %v521, %v526
    %530 = vrot.lane.b32.xlu0 %v528, 32
    %v531 = vpop.permute.xlu0 %530
    %v533 = vadd.f32 %v523, %v531
    %v534 = vtanh.pop %v533
    %536 = vrot.lane.b32.xlu0 %v534, 64
    %v537 = vpop.permute.xlu0 %536
    %v539 = vmul.f32 %v521, %v537
    %541 = vrot.lane.b32.xlu0 %v539, 32
    %v542 = vpop.permute.xlu0 %541
    %544 = vst.msk [vmem:[#allocation2 + $0xc] sm:$0x3] %vm136, %v542
    %s545 = scalar_lea.vmem [#allocation3], 7
    %v546 = vld [vmem:[%s545] ss:$8 sm:$0x3]
    %v547 = vsel %vm140, %v542, 0
    %549 = vmatpush.msra.mxu0 0.0
    %550 = vmatpush.msra.mxu0 0.0
    %551 = vmatpush.msra.mxu0 0.0
    %552 = vmatpush.msra.mxu0 0.0
    %553 = vmatpush.msra.mxu0 0.0
    %554 = vmatpush.msra.mxu0 0.0
    %555 = vmatpush.msra.mxu0 0.0
    %556 = vmatpush.msra.mxu0 0.0
    %557 = vmatpush.msra.mxu0 0.0
    %558 = vmatpush.msra.mxu0 0.0
    %559 = vmatpush.msra.mxu0 0.0
    %560 = vmatpush.msra.mxu0 0.0
    %561 = vmatpush.msra.mxu0 %v99
    %562 = vmatpush.msra.mxu0 %v98
    %563 = vmatpush.msra.mxu0 %v97
    %564 = vmatpush.msra.mxu0 %v96
    %565 = vmatmul.f32.gmra.mxu0 %v547
    %v566 = vpop.f32.mrf.mxu0
    %v567 = vadd.f32 0.0, %v566
    %568 = vdwg.mxu0
    %v569 = vadd.f32 %v546, %v567
    %v570 = vxor.u32 %v569, 2147483648
    %v571 = vmul.f32 %v570, 1.442695
    %v572 = vpow.pop %v571
    %v573 = vadd.f32 %v572, 1.0
    %v574 = vrcp.pop %v573
    %v575 = vmul.f32 %v573, %v574
    %v576 = vsub.f32 1.0, %v575
    %v577 = vmul.f32 %v574, %v576
    %v578 = vadd.f32 %v574, %v577
    %vm579 = vweird.f32 %v573
    %vm580 = vweird.f32 %v574
    %vm581 = vmor %vm579, %vm580
    %v582 = vsel %vm581, %v574, %v578
    %v583 = vand.u32 2147483647, %v573
    %vm584 = vcmp.eq.f32.partialorder %v583, 8.507059e+37
    %v585 = vand.u32 %v573, 2147483648
    %v586 = vor.u32 1.1754944e-38, %v585
    %v587 = vsel %vm584, %v586, %v582
    %v588 = vmul.f32 1.0, %v587
    %v589 = vtanh.pop %v569
    %v590 = vmul.f32 %v588, %v533
    %592 = vrot.lane.b32.xlu0 %v589, 64
    %v593 = vpop.permute.xlu0 %592
    %v595 = vmul.f32 %v588, %v593
    %597 = vrot.lane.b32.xlu0 %v595, 32
    %v598 = vpop.permute.xlu0 %597
    %v600 = vadd.f32 %v590, %v598
    %v601 = vtanh.pop %v600
    %603 = vrot.lane.b32.xlu0 %v601, 64
    %v604 = vpop.permute.xlu0 %603
    %v606 = vmul.f32 %v588, %v604
    %608 = vrot.lane.b32.xlu0 %v606, 32
    %v609 = vpop.permute.xlu0 %608
    %611 = vst.msk [vmem:[#allocation2 + $0xe] sm:$0x3] %vm136, %v609
    %s612 = scalar_lea.vmem [#allocation4], 32
    %v613 = vld [vmem:[%s612] sm:$0xff]
    %v614 = vld [vmem:[%s612 + $0x8] sm:$0xff]
    %v615 = vld [vmem:[%s612 + $0x10] sm:$0xff]
    %v616 = vld [vmem:[%s612 + $0x18] sm:$0xff]
    %s617 = scalar_lea.vmem %s3, 1
    %v618 = vld [vmem:[%s617] sm:$0x1]
    %v619 = vld [vmem:[#allocation2] sm:$0xff]
    %v620 = vld [vmem:[#allocation2 + $0x8] sm:$0xff]
    %v622 = vperm.slane %v618, 0
    %v625 = vsel %vm140, %v619, 0
    %v628 = vsel %vm140, %v620, 0
    %630 = vmatpush.msra.mxu0 0.0
    %631 = vmatpush.msra.mxu0 0.0
    %632 = vmatpush.msra.mxu0 0.0
    %633 = vmatpush.msra.mxu0 0.0
    %634 = vmatpush.msra.mxu0 0.0
    %635 = vmatpush.msra.mxu0 0.0
    %636 = vmatpush.msra.mxu0 0.0
    %637 = vmatpush.msra.mxu0 0.0
    %638 = vmatpush.msra.mxu0 0.0
    %639 = vmatpush.msra.mxu0 0.0
    %640 = vmatpush.msra.mxu0 0.0
    %641 = vmatpush.msra.mxu0 0.0
    %642 = vmatpush.msra.mxu0 %v616
    %643 = vmatpush.msra.mxu0 %v615
    %644 = vmatpush.msra.mxu0 %v614
    %645 = vmatpush.msra.mxu0 %v613
    %646 = vmatmul.f32.gmra.mxu0 %v625
    %v647 = vpop.f32.mrf.mxu0
    %v648 = vadd.f32 %v622, %v647
    %649 = vmatmul.f32.gmra.mxu0 %v628
    %v650 = vpop.f32.mrf.mxu0
    %v651 = vadd.f32 %v622, %v650
    %652 = vdwg.mxu0
    %653 = vst [vmem:[#allocation3] sm:$0xff] %v648
    %654 = vst [vmem:[#allocation3 + $0x8] sm:$0xff] %v651
    %s655 = scalar_lea.vmem [#allocation7], 32
    %v656 = vld [vmem:[%s655] sm:$0xff]
    %v657 = vld [vmem:[%s655 + $0x8] sm:$0xff]
    %v658 = vld [vmem:[%s655 + $0x10] sm:$0xff]
    %v659 = vld [vmem:[%s655 + $0x18] sm:$0xff]
    %v660 = vld [vmem:[#allocation3] sm:$0x3]
    %v661 = vxor.u32 %v660, 2147483648
    %v662 = vmul.f32 %v661, 1.442695
    %v663 = vpow.pop %v662
    %v664 = vadd.f32 %v663, 1.0
    %v665 = vrcp.pop %v664
    %v666 = vmul.f32 %v664, %v665
    %v667 = vsub.f32 1.0, %v666
    %v668 = vmul.f32 %v665, %v667
    %v669 = vadd.f32 %v665, %v668
    %vm670 = vweird.f32 %v664
    %vm671 = vweird.f32 %v665
    %vm672 = vmor %vm670, %vm671
    %v673 = vsel %vm672, %v665, %v669
    %v674 = vand.u32 2147483647, %v664
    %vm675 = vcmp.eq.f32.partialorder %v674, 8.507059e+37
    %v676 = vand.u32 %v664, 2147483648
    %v677 = vor.u32 1.1754944e-38, %v676
    %v678 = vsel %vm675, %v677, %v673
    %v679 = vmul.f32 1.0, %v678
    %v680 = vtanh.pop %v660
    %682 = vrot.lane.b32.xlu0 %v680, 64
    %v683 = vpop.permute.xlu0 %682
    %v685 = vmul.f32 %v679, %v683
    %v686 = vtanh.pop %v685
    %688 = vrot.lane.b32.xlu0 %v686, 96
    %v689 = vpop.permute.xlu0 %688
    %v691 = vmul.f32 %v679, %v689
    %v692 = vld [vmem:[#allocation3 + $0x2] sm:$0x3]
    %694 = vrot.lane.b32.xlu0 %v691, 32
    %v695 = vpop.permute.xlu0 %694
    %v696 = vsel %vm140, %v695, 0
    %698 = vmatpush.msra.mxu0 0.0
    %699 = vmatpush.msra.mxu0 0.0
    %700 = vmatpush.msra.mxu0 0.0
    %701 = vmatpush.msra.mxu0 0.0
    %702 = vmatpush.msra.mxu0 0.0
    %703 = vmatpush.msra.mxu0 0.0
    %704 = vmatpush.msra.mxu0 0.0
    %705 = vmatpush.msra.mxu0 0.0
    %706 = vmatpush.msra.mxu0 0.0
    %707 = vmatpush.msra.mxu0 0.0
    %708 = vmatpush.msra.mxu0 0.0
    %709 = vmatpush.msra.mxu0 0.0
    %710 = vmatpush.msra.mxu0 %v659
    %711 = vmatpush.msra.mxu0 %v658
    %712 = vmatpush.msra.mxu0 %v657
    %713 = vmatpush.msra.mxu0 %v656
    %714 = vmatmul.f32.gmra.mxu0 %v696
    %v715 = vpop.f32.mrf.mxu0
    %v716 = vadd.f32 0.0, %v715
    %717 = vdwg.mxu0
    %v718 = vadd.f32 %v692, %v716
    %v719 = vxor.u32 %v718, 2147483648
    %v720 = vmul.f32 %v719, 1.442695
    %v721 = vpow.pop %v720
    %v722 = vadd.f32 %v721, 1.0
    %v723 = vrcp.pop %v722
    %v724 = vmul.f32 %v722, %v723
    %v725 = vsub.f32 1.0, %v724
    %v726 = vmul.f32 %v723, %v725
    %v727 = vadd.f32 %v723, %v726
    %vm728 = vweird.f32 %v722
    %vm729 = vweird.f32 %v723
    %vm730 = vmor %vm728, %vm729
    %v731 = vsel %vm730, %v723, %v727
    %v732 = vand.u32 2147483647, %v722
    %vm733 = vcmp.eq.f32.partialorder %v732, 8.507059e+37
    %v734 = vand.u32 %v722, 2147483648
    %v735 = vor.u32 1.1754944e-38, %v734
    %v736 = vsel %vm733, %v735, %v731
    %v737 = vmul.f32 1.0, %v736
    %v738 = vtanh.pop %v718
    %740 = vrot.lane.b32.xlu0 %v685, 32
    %v741 = vpop.permute.xlu0 %740
    %v743 = vmul.f32 %v737, %v741
    %745 = vrot.lane.b32.xlu0 %v738, 64
    %v746 = vpop.permute.xlu0 %745
    %v748 = vmul.f32 %v737, %v746
    %750 = vrot.lane.b32.xlu0 %v748, 32
    %v751 = vpop.permute.xlu0 %750
    %v753 = vadd.f32 %v743, %v751
    %v754 = vtanh.pop %v753
    %756 = vrot.lane.b32.xlu0 %v754, 64
    %v757 = vpop.permute.xlu0 %756
    %v759 = vmul.f32 %v737, %v757
    %v760 = vld [vmem:[#allocation3 + $0x4] sm:$0x3]
    %762 = vrot.lane.b32.xlu0 %v759, 32
    %v763 = vpop.permute.xlu0 %762
    %v764 = vsel %vm140, %v763, 0
    %766 = vmatpush.msra.mxu0 0.0
    %767 = vmatpush.msra.mxu0 0.0
    %768 = vmatpush.msra.mxu0 0.0
    %769 = vmatpush.msra.mxu0 0.0
    %770 = vmatpush.msra.mxu0 0.0
    %771 = vmatpush.msra.mxu0 0.0
    %772 = vmatpush.msra.mxu0 0.0
    %773 = vmatpush.msra.mxu0 0.0
    %774 = vmatpush.msra.mxu0 0.0
    %775 = vmatpush.msra.mxu0 0.0
    %776 = vmatpush.msra.mxu0 0.0
    %777 = vmatpush.msra.mxu0 0.0
    %778 = vmatpush.msra.mxu0 %v659
    %779 = vmatpush.msra.mxu0 %v658
    %780 = vmatpush.msra.mxu0 %v657
    %781 = vmatpush.msra.mxu0 %v656
    %782 = vmatmul.f32.gmra.mxu0 %v764
    %v783 = vpop.f32.mrf.mxu0
    %v784 = vadd.f32 0.0, %v783
    %785 = vdwg.mxu0
    %v786 = vadd.f32 %v760, %v784
    %v787 = vxor.u32 %v786, 2147483648
    %v788 = vmul.f32 %v787, 1.442695
    %v789 = vpow.pop %v788
    %v790 = vadd.f32 %v789, 1.0
    %v791 = vrcp.pop %v790
    %v792 = vmul.f32 %v790, %v791
    %v793 = vsub.f32 1.0, %v792
    %v794 = vmul.f32 %v791, %v793
    %v795 = vadd.f32 %v791, %v794
    %vm796 = vweird.f32 %v790
    %vm797 = vweird.f32 %v791
    %vm798 = vmor %vm796, %vm797
    %v799 = vsel %vm798, %v791, %v795
    %v800 = vand.u32 2147483647, %v790
    %vm801 = vcmp.eq.f32.partialorder %v800, 8.507059e+37
    %v802 = vand.u32 %v790, 2147483648
    %v803 = vor.u32 1.1754944e-38, %v802
    %v804 = vsel %vm801, %v803, %v799
    %v805 = vmul.f32 1.0, %v804
    %v806 = vtanh.pop %v786
    %v807 = vmul.f32 %v805, %v753
    %809 = vrot.lane.b32.xlu0 %v806, 64
    %v810 = vpop.permute.xlu0 %809
    %v812 = vmul.f32 %v805, %v810
    %814 = vrot.lane.b32.xlu0 %v812, 32
    %v815 = vpop.permute.xlu0 %814
    %v817 = vadd.f32 %v807, %v815
    %v818 = vtanh.pop %v817
    %820 = vrot.lane.b32.xlu0 %v818, 64
    %v821 = vpop.permute.xlu0 %820
    %v823 = vmul.f32 %v805, %v821
    %v824 = vld [vmem:[#allocation3 + $0x6] sm:$0x3]
    %826 = vrot.lane.b32.xlu0 %v823, 32
    %v827 = vpop.permute.xlu0 %826
    %v828 = vsel %vm140, %v827, 0
    %830 = vmatpush.msra.mxu0 0.0
    %831 = vmatpush.msra.mxu0 0.0
    %832 = vmatpush.msra.mxu0 0.0
    %833 = vmatpush.msra.mxu0 0.0
    %834 = vmatpush.msra.mxu0 0.0
    %835 = vmatpush.msra.mxu0 0.0
    %836 = vmatpush.msra.mxu0 0.0
    %837 = vmatpush.msra.mxu0 0.0
    %838 = vmatpush.msra.mxu0 0.0
    %839 = vmatpush.msra.mxu0 0.0
    %840 = vmatpush.msra.mxu0 0.0
    %841 = vmatpush.msra.mxu0 0.0
    %842 = vmatpush.msra.mxu0 %v659
    %843 = vmatpush.msra.mxu0 %v658
    %844 = vmatpush.msra.mxu0 %v657
    %845 = vmatpush.msra.mxu0 %v656
    %846 = vmatmul.f32.gmra.mxu0 %v828
    %v847 = vpop.f32.mrf.mxu0
    %v848 = vadd.f32 0.0, %v847
    %849 = vdwg.mxu0
    %v850 = vadd.f32 %v824, %v848
    %v851 = vxor.u32 %v850, 2147483648
    %v852 = vmul.f32 %v851, 1.442695
    %v853 = vpow.pop %v852
    %v854 = vadd.f32 %v853, 1.0
    %v855 = vrcp.pop %v854
    %v856 = vmul.f32 %v854, %v855
    %v857 = vsub.f32 1.0, %v856
    %v858 = vmul.f32 %v855, %v857
    %v859 = vadd.f32 %v855, %v858
    %vm860 = vweird.f32 %v854
    %vm861 = vweird.f32 %v855
    %vm862 = vmor %vm860, %vm861
    %v863 = vsel %vm862, %v855, %v859
    %v864 = vand.u32 2147483647, %v854
    %vm865 = vcmp.eq.f32.partialorder %v864, 8.507059e+37
    %v866 = vand.u32 %v854, 2147483648
    %v867 = vor.u32 1.1754944e-38, %v866
    %v868 = vsel %vm865, %v867, %v863
    %v869 = vmul.f32 1.0, %v868
    %v870 = vtanh.pop %v850
    %v871 = vmul.f32 %v869, %v817
    %873 = vrot.lane.b32.xlu0 %v870, 64
    %v874 = vpop.permute.xlu0 %873
    %v876 = vmul.f32 %v869, %v874
    %878 = vrot.lane.b32.xlu0 %v876, 32
    %v879 = vpop.permute.xlu0 %878
    %v881 = vadd.f32 %v871, %v879
    %v882 = vtanh.pop %v881
    %884 = vrot.lane.b32.xlu0 %v882, 64
    %v885 = vpop.permute.xlu0 %884
    %v887 = vmul.f32 %v869, %v885
    %v888 = vld [vmem:[#allocation3 + $0x8] sm:$0x3]
    %890 = vrot.lane.b32.xlu0 %v887, 32
    %v891 = vpop.permute.xlu0 %890
    %v892 = vsel %vm140, %v891, 0
    %894 = vmatpush.msra.mxu0 0.0
    %895 = vmatpush.msra.mxu0 0.0
    %896 = vmatpush.msra.mxu0 0.0
    %897 = vmatpush.msra.mxu0 0.0
    %898 = vmatpush.msra.mxu0 0.0
    %899 = vmatpush.msra.mxu0 0.0
    %900 = vmatpush.msra.mxu0 0.0
    %901 = vmatpush.msra.mxu0 0.0
    %902 = vmatpush.msra.mxu0 0.0
    %903 = vmatpush.msra.mxu0 0.0
    %904 = vmatpush.msra.mxu0 0.0
    %905 = vmatpush.msra.mxu0 0.0
    %906 = vmatpush.msra.mxu0 %v659
    %907 = vmatpush.msra.mxu0 %v658
    %908 = vmatpush.msra.mxu0 %v657
    %909 = vmatpush.msra.mxu0 %v656
    %910 = vmatmul.f32.gmra.mxu0 %v892
    %v911 = vpop.f32.mrf.mxu0
    %v912 = vadd.f32 0.0, %v911
    %913 = vdwg.mxu0
    %v914 = vadd.f32 %v888, %v912
    %v915 = vxor.u32 %v914, 2147483648
    %v916 = vmul.f32 %v915, 1.442695
    %v917 = vpow.pop %v916
    %v918 = vadd.f32 %v917, 1.0
    %v919 = vrcp.pop %v918
    %v920 = vmul.f32 %v918, %v919
    %v921 = vsub.f32 1.0, %v920
    %v922 = vmul.f32 %v919, %v921
    %v923 = vadd.f32 %v919, %v922
    %vm924 = vweird.f32 %v918
    %vm925 = vweird.f32 %v919
    %vm926 = vmor %vm924, %vm925
    %v927 = vsel %vm926, %v919, %v923
    %v928 = vand.u32 2147483647, %v918
    %vm929 = vcmp.eq.f32.partialorder %v928, 8.507059e+37
    %v930 = vand.u32 %v918, 2147483648
    %v931 = vor.u32 1.1754944e-38, %v930
    %v932 = vsel %vm929, %v931, %v927
    %v933 = vmul.f32 1.0, %v932
    %v934 = vtanh.pop %v914
    %v935 = vmul.f32 %v933, %v881
    %937 = vrot.lane.b32.xlu0 %v934, 64
    %v938 = vpop.permute.xlu0 %937
    %v940 = vmul.f32 %v933, %v938
    %942 = vrot.lane.b32.xlu0 %v940, 32
    %v943 = vpop.permute.xlu0 %942
    %v945 = vadd.f32 %v935, %v943
    %v946 = vtanh.pop %v945
    %948 = vrot.lane.b32.xlu0 %v946, 64
    %v949 = vpop.permute.xlu0 %948
    %v951 = vmul.f32 %v933, %v949
    %v952 = vld [vmem:[#allocation3 + $0xa] sm:$0x3]
    %954 = vrot.lane.b32.xlu0 %v951, 32
    %v955 = vpop.permute.xlu0 %954
    %v956 = vsel %vm140, %v955, 0
    %958 = vmatpush.msra.mxu0 0.0
    %959 = vmatpush.msra.mxu0 0.0
    %960 = vmatpush.msra.mxu0 0.0
    %961 = vmatpush.msra.mxu0 0.0
    %962 = vmatpush.msra.mxu0 0.0
    %963 = vmatpush.msra.mxu0 0.0
    %964 = vmatpush.msra.mxu0 0.0
    %965 = vmatpush.msra.mxu0 0.0
    %966 = vmatpush.msra.mxu0 0.0
    %967 = vmatpush.msra.mxu0 0.0
    %968 = vmatpush.msra.mxu0 0.0
    %969 = vmatpush.msra.mxu0 0.0
    %970 = vmatpush.msra.mxu0 %v659
    %971 = vmatpush.msra.mxu0 %v658
    %972 = vmatpush.msra.mxu0 %v657
    %973 = vmatpush.msra.mxu0 %v656
    %974 = vmatmul.f32.gmra.mxu0 %v956
    %v975 = vpop.f32.mrf.mxu0
    %v976 = vadd.f32 0.0, %v975
    %977 = vdwg.mxu0
    %v978 = vadd.f32 %v952, %v976
    %v979 = vxor.u32 %v978, 2147483648
    %v980 = vmul.f32 %v979, 1.442695
    %v981 = vpow.pop %v980
    %v982 = vadd.f32 %v981, 1.0
    %v983 = vrcp.pop %v982
    %v984 = vmul.f32 %v982, %v983
    %v985 = vsub.f32 1.0, %v984
    %v986 = vmul.f32 %v983, %v985
    %v987 = vadd.f32 %v983, %v986
    %vm988 = vweird.f32 %v982
    %vm989 = vweird.f32 %v983
    %vm990 = vmor %vm988, %vm989
    %v991 = vsel %vm990, %v983, %v987
    %v992 = vand.u32 2147483647, %v982
    %vm993 = vcmp.eq.f32.partialorder %v992, 8.507059e+37
    %v994 = vand.u32 %v982, 2147483648
    %v995 = vor.u32 1.1754944e-38, %v994
    %v996 = vsel %vm993, %v995, %v991
    %v997 = vmul.f32 1.0, %v996
    %v998 = vtanh.pop %v978
    %v999 = vmul.f32 %v997, %v945
    %1001 = vrot.lane.b32.xlu0 %v998, 64
    %v1002 = vpop.permute.xlu0 %1001
    %v1004 = vmul.f32 %v997, %v1002
    %1006 = vrot.lane.b32.xlu0 %v1004, 32
    %v1007 = vpop.permute.xlu0 %1006
    %v1009 = vadd.f32 %v999, %v1007
    %v1010 = vtanh.pop %v1009
    %1012 = vrot.lane.b32.xlu0 %v1010, 64
    %v1013 = vpop.permute.xlu0 %1012
    %v1015 = vmul.f32 %v997, %v1013
    %v1016 = vld [vmem:[#allocation3 + $0xc] sm:$0x3]
    %1018 = vrot.lane.b32.xlu0 %v1015, 32
    %v1019 = vpop.permute.xlu0 %1018
    %v1020 = vsel %vm140, %v1019, 0
    %1022 = vmatpush.msra.mxu0 0.0
    %1023 = vmatpush.msra.mxu0 0.0
    %1024 = vmatpush.msra.mxu0 0.0
    %1025 = vmatpush.msra.mxu0 0.0
    %1026 = vmatpush.msra.mxu0 0.0
    %1027 = vmatpush.msra.mxu0 0.0
    %1028 = vmatpush.msra.mxu0 0.0
    %1029 = vmatpush.msra.mxu0 0.0
    %1030 = vmatpush.msra.mxu0 0.0
    %1031 = vmatpush.msra.mxu0 0.0
    %1032 = vmatpush.msra.mxu0 0.0
    %1033 = vmatpush.msra.mxu0 0.0
    %1034 = vmatpush.msra.mxu0 %v659
    %1035 = vmatpush.msra.mxu0 %v658
    %1036 = vmatpush.msra.mxu0 %v657
    %1037 = vmatpush.msra.mxu0 %v656
    %1038 = vmatmul.f32.gmra.mxu0 %v1020
    %v1039 = vpop.f32.mrf.mxu0
    %v1040 = vadd.f32 0.0, %v1039
    %1041 = vdwg.mxu0
    %v1042 = vadd.f32 %v1016, %v1040
    %v1043 = vxor.u32 %v1042, 2147483648
    %v1044 = vmul.f32 %v1043, 1.442695
    %v1045 = vpow.pop %v1044
    %v1046 = vadd.f32 %v1045, 1.0
    %v1047 = vrcp.pop %v1046
    %v1048 = vmul.f32 %v1046, %v1047
    %v1049 = vsub.f32 1.0, %v1048
    %v1050 = vmul.f32 %v1047, %v1049
    %v1051 = vadd.f32 %v1047, %v1050
    %vm1052 = vweird.f32 %v1046
    %vm1053 = vweird.f32 %v1047
    %vm1054 = vmor %vm1052, %vm1053
    %v1055 = vsel %vm1054, %v1047, %v1051
    %v1056 = vand.u32 2147483647, %v1046
    %vm1057 = vcmp.eq.f32.partialorder %v1056, 8.507059e+37
    %v1058 = vand.u32 %v1046, 2147483648
    %v1059 = vor.u32 1.1754944e-38, %v1058
    %v1060 = vsel %vm1057, %v1059, %v1055
    %v1061 = vmul.f32 1.0, %v1060
    %v1062 = vtanh.pop %v1042
    %v1063 = vmul.f32 %v1061, %v1009
    %1065 = vrot.lane.b32.xlu0 %v1062, 64
    %v1066 = vpop.permute.xlu0 %1065
    %v1068 = vmul.f32 %v1061, %v1066
    %1070 = vrot.lane.b32.xlu0 %v1068, 32
    %v1071 = vpop.permute.xlu0 %1070
    %v1073 = vadd.f32 %v1063, %v1071
    %v1074 = vtanh.pop %v1073
    %1076 = vrot.lane.b32.xlu0 %v1074, 64
    %v1077 = vpop.permute.xlu0 %1076
    %v1079 = vmul.f32 %v1061, %v1077
    %v1080 = vld [vmem:[#allocation3 + $0xe] sm:$0x3]
    %1082 = vrot.lane.b32.xlu0 %v1079, 32
    %v1083 = vpop.permute.xlu0 %1082
    %v1084 = vsel %vm140, %v1083, 0
    %1086 = vmatpush.msra.mxu0 0.0
    %1087 = vmatpush.msra.mxu0 0.0
    %1088 = vmatpush.msra.mxu0 0.0
    %1089 = vmatpush.msra.mxu0 0.0
    %1090 = vmatpush.msra.mxu0 0.0
    %1091 = vmatpush.msra.mxu0 0.0
    %1092 = vmatpush.msra.mxu0 0.0
    %1093 = vmatpush.msra.mxu0 0.0
    %1094 = vmatpush.msra.mxu0 0.0
    %1095 = vmatpush.msra.mxu0 0.0
    %1096 = vmatpush.msra.mxu0 0.0
    %1097 = vmatpush.msra.mxu0 0.0
    %1098 = vmatpush.msra.mxu0 %v659
    %1099 = vmatpush.msra.mxu0 %v658
    %1100 = vmatpush.msra.mxu0 %v657
    %1101 = vmatpush.msra.mxu0 %v656
    %1102 = vmatmul.f32.gmra.mxu0 %v1084
    %v1103 = vpop.f32.mrf.mxu0
    %v1104 = vadd.f32 0.0, %v1103
    %1105 = vdwg.mxu0
    %v1106 = vadd.f32 %v1080, %v1104
    %v1107 = vxor.u32 %v1106, 2147483648
    %v1108 = vmul.f32 %v1107, 1.442695
    %v1109 = vpow.pop %v1108
    %v1110 = vadd.f32 %v1109, 1.0
    %v1111 = vrcp.pop %v1110
    %v1112 = vmul.f32 %v1110, %v1111
    %v1113 = vsub.f32 1.0, %v1112
    %v1114 = vmul.f32 %v1111, %v1113
    %v1115 = vadd.f32 %v1111, %v1114
    %vm1116 = vweird.f32 %v1110
    %vm1117 = vweird.f32 %v1111
    %vm1118 = vmor %vm1116, %vm1117
    %v1119 = vsel %vm1118, %v1111, %v1115
    %v1120 = vand.u32 2147483647, %v1110
    %vm1121 = vcmp.eq.f32.partialorder %v1120, 8.507059e+37
    %v1122 = vand.u32 %v1110, 2147483648
    %v1123 = vor.u32 1.1754944e-38, %v1122
    %v1124 = vsel %vm1121, %v1123, %v1119
    %v1125 = vmul.f32 1.0, %v1124
    %v1126 = vtanh.pop %v1106
    %v1127 = vmul.f32 %v1125, %v1073
    %1129 = vrot.lane.b32.xlu0 %v1126, 64
    %v1130 = vpop.permute.xlu0 %1129
    %v1132 = vmul.f32 %v1125, %v1130
    %1134 = vrot.lane.b32.xlu0 %v1132, 32
    %v1135 = vpop.permute.xlu0 %1134
    %v1137 = vadd.f32 %v1127, %v1135
    %v1138 = vtanh.pop %v1137
    %1140 = vrot.lane.b32.xlu0 %v1138, 64
    %v1141 = vpop.permute.xlu0 %1140
    %v1143 = vmul.f32 %v1125, %v1141
    %v1144 = vld [vmem:[%s4] sm:$0xff]
    %v1145 = vld [vmem:[%s4 + $0x8] sm:$0xff]
    %v1146 = vld [vmem:[%s4 + $0x10] sm:$0xff]
    %v1147 = vld [vmem:[%s4 + $0x18] sm:$0xff]
    %v1148 = vld [vmem:[%s5] sm:$0x1]
    %v1150 = vperm.slane %v1148, 0
    %1153 = vrot.lane.b32.xlu0 %v1143, 32
    %v1154 = vpop.permute.xlu0 %1153
    %v1155 = vsel %vm140, %v1154, 0
    %1157 = vmatpush.msra.mxu0 0.0
    %1158 = vmatpush.msra.mxu0 0.0
    %1159 = vmatpush.msra.mxu0 0.0
    %1160 = vmatpush.msra.mxu0 0.0
    %1161 = vmatpush.msra.mxu0 0.0
    %1162 = vmatpush.msra.mxu0 0.0
    %1163 = vmatpush.msra.mxu0 0.0
    %1164 = vmatpush.msra.mxu0 0.0
    %1165 = vmatpush.msra.mxu0 0.0
    %1166 = vmatpush.msra.mxu0 0.0
    %1167 = vmatpush.msra.mxu0 0.0
    %1168 = vmatpush.msra.mxu0 0.0
    %1169 = vmatpush.msra.mxu0 %v1147
    %1170 = vmatpush.msra.mxu0 %v1146
    %1171 = vmatpush.msra.mxu0 %v1145
    %1172 = vmatpush.msra.mxu0 %v1144
    %1173 = vmatmul.f32.gmra.mxu0 %v1155
    %v1174 = vpop.f32.mrf.mxu0
    %v1175 = vadd.f32 %v1150, %v1174
    %1176 = vdwg.mxu0
    %vm1177 = vcmask 58368
    %1178 = vst.msk [vmem:[#allocation9] sm:$0x3] %vm1177, %v1175
    // Predicated region
    $region34: #{simple_lstm_forward.1} parent=1 // pred_check
      _
    $region35: #{simple_lstm_forward.1} parent=1 // pred_check_branch
      %1180 = sbr.rel (0) target = $region37
    $region36: #{simple_lstm_forward.1} parent=1 // pred_region
      %1182 = vsyncadd [#allocation6], 0
      %s1184 = sshll.u32 [#allocation9], 4
      %s1185 = int_to_ptr.vmem [resolvable:$true] %s1184
      %s1186 = sshll.u32 %s6, 4
      %s1187 = int_to_ptr.hbm [resolvable:$true] %s1186
      %1189 = dma.vmem_to_hbm [thread:$0]  %s1185, 32, %s1187, [#allocation6]
    $region37: #{simple_lstm_forward.1} parent=1 // pred_fallthru
      _
    // Predicated region
    $region38: #{simple_lstm_forward.1} parent=1 // pred_check
      _
    $region39: #{simple_lstm_forward.1} parent=1 // pred_check_branch
      %1191 = sbr.rel (0) target = $region41
    $region40: #{simple_lstm_forward.1} parent=1 // pred_region
      %1193 = dma.done [#allocation6], 32
    $region41: #{simple_lstm_forward.1} parent=1 // pred_fallthru
      _
    %1194 = vsyncpa [#allocation5], 1
    %1195 = vsyncpa [#allocation8], 1
    %1196 = vsyncpa [#allocation6], 1

</llo_original>
